<compile_context>
chip_gen: v7x
topology: tpu7x:2x2x1
jax: 0.10.0
libtpu: 0.0.40
codegen_flags: <defaults>
</compile_context>

<pallas_src>
import functools

import jax
import jax.numpy as jnp
from jax import lax
from jax.experimental import pallas as pl
from jax.experimental.pallas import tpu as pltpu

# ----- model dimensions (small, consistent with the module's __init__) -----
OBS_DIM = 11
ACT_DIM = 5
OBS_EMB = 32   # config_seq.observ_embedder.hidden_size
ACT_EMB = 16   # config_seq.action_embedder.hidden_size
RWD_EMB = 16   # config_seq.reward_embedder.hidden_size
RNN_IN = ACT_EMB + RWD_EMB + OBS_EMB   # 64
HIDDEN = 32    # seq_model.hidden_size
Q_H1 = 32      # config_critic.hidden_dims
Q_H2 = 32
NQ = 2         # twin Q heads

# Merged input column layout: [prev_action | reward | obs | cur_action | 1 | 0]
XC_PA = 0
XC_RW = ACT_DIM                        # 5
XC_OB = ACT_DIM + 1                    # 6
XC_CA = ACT_DIM + 1 + OBS_DIM          # 17
XC_ONE = XC_CA + ACT_DIM               # 22
X_FEAT = XC_ONE + 2                    # 24 (one zero pad column -> 8-aligned)

# Packed weight-slab row offsets (all 8-aligned).
R_EMB = 0            # (24, 64)  block-diag embedder, bias on the ones row
R_WIH = 24           # (64, 96)  GRU input projection (gates r,z,n)
R_WHH = 88           # (32, 96)  GRU hidden projection (gates r,z,n)
R_W1H = 120          # (32, 64)  Q-head layer-1, hidden part (q1 | q2)
R_W1A = 152          # (24, 64)  Q-head layer-1, action part + bias (ones row)
R_W2 = 176           # (64, 65)  Q-head layer-2 block-diag (+ const-1 column)
R_W3T = 240          # (8, 65)   Q-head layer-3, transposed, rows 0/1 = q1/q2
R_BRZN = 248         # (1, 96)   GRU input-side bias (r,z combined with bhh)
R_BHHN = 256         # (1, 32)   bhh_n (multiplied by r inside the n gate)
R_B2 = 264           # (1, 65)   Q-head layer-2 bias (+ 1.0 in column 64)
SLAB_ROWS = 272
SLAB_COLS = 128


# ------------------------------- kernel -------------------------------------
def _critic_rnn_kernel(x_ref, w_ref, out_ref, h_scr, *, tt, nb):
  H = HIDDEN
  tb = pl.program_id(1)

  @pl.when(tb == 0)
  def _():
    # seq_model.get_zero_internal_state(): reset at the start of every sequence
    # (holds per batch block, so it also works with the parallel batch axis).
    h_scr[...] = jnp.zeros_like(h_scr)

  dot = functools.partial(jnp.dot, preferred_element_type=jnp.float32)

  # ---- static views into the packed weight slab (free) ----
  Wemb = w_ref[R_EMB:R_EMB + X_FEAT, 0:RNN_IN]            # (24, 64)
  Wih = w_ref[R_WIH:R_WIH + RNN_IN, 0:3 * H]              # (64, 96)
  Whh = w_ref[R_WHH:R_WHH + H, 0:3 * H]                   # (32, 96)
  W1h = w_ref[R_W1H:R_W1H + H, 0:2 * Q_H1]                # (32, 64)
  W1a = w_ref[R_W1A:R_W1A + X_FEAT, 0:2 * Q_H1]           # (24, 64)
  W2 = w_ref[R_W2:R_W2 + 2 * Q_H1, 0:2 * Q_H2 + 1]        # (64, 65)
  W3T = w_ref[R_W3T:R_W3T + 8, 0:2 * Q_H2 + 1]            # (8, 65), rows 2..7 = 0
  b_rzn = w_ref[R_BRZN:R_BRZN + 1, 0:3 * H]               # (1, 96)
  bhh_n = w_ref[R_BHHN:R_BHHN + 1, 0:H]                   # (1, 32)
  b2 = w_ref[R_B2:R_B2 + 1, 0:2 * Q_H2 + 1]               # (1, 65), col 64 = 1

  # ---- hoisted, non-recurrent block-wide matmuls ----
  x = x_ref[...]                                          # (blk_rows, 24)
  emb = jax.nn.relu(dot(x, Wemb))                         # (blk_rows, 64)
  gx = dot(emb, Wih) + b_rzn                              # (blk_rows, 96)

  # ---- serial GRU recurrence: one (nb,32)x(32,96) matmul + gate math ----
  h = h_scr[...]                                          # (nb, 32)
  hs = []
  for t in range(tt):                                     # fully unrolled
    gx_t = gx[t * nb:(t + 1) * nb, :]
    gh = dot(h, Whh)                                      # (nb, 96)
    rz = jax.nn.sigmoid(gx_t[:, 0:2 * H] + gh[:, 0:2 * H])
    r = rz[:, 0:H]
    z = rz[:, H:2 * H]
    n = jnp.tanh(gx_t[:, 2 * H:] + r * (gh[:, 2 * H:] + bhh_n))
    h = (1.0 - z) * n + z * h
    hs.append(h)
  h_scr[...] = h                                          # carry across blocks

  # ---- hoisted twin-Q heads (qf1 / qf2 fused), whole block at once ----
  h_all = jnp.concatenate(hs, axis=0)                     # (blk_rows, 32)
  x1 = jax.nn.relu(dot(h_all, W1h) + dot(x, W1a))         # (blk_rows, 64)
  x2 = jax.nn.relu(dot(x1, W2) + b2)                      # (blk_rows, 65), col64=1
  # lane-dense transposed output: (8, blk_rows); rows 0/1 are q1/q2 (+ bias via
  # the constant-1 column of x2).
  q8 = lax.dot_general(W3T, x2, (((1,), (1,)), ((), ())),
                       preferred_element_type=jnp.float32)
  out_ref[...] = q8[0:NQ, :]


# --------------------- pack original params into one weight slab ------------
def _pack_weights(p):
  H = HIDDEN
  W = jnp.zeros((SLAB_ROWS, SLAB_COLS), jnp.float32)

  # Block-diagonal embedder; biases folded via the ones column of x.
  W = W.at[R_EMB + XC_PA:R_EMB + XC_PA + ACT_DIM, 0:ACT_EMB].set(p["Wa"])
  W = W.at[R_EMB + XC_RW:R_EMB + XC_RW + 1, ACT_EMB:ACT_EMB + RWD_EMB].set(p["Wr"])
  W = W.at[R_EMB + XC_OB:R_EMB + XC_OB + OBS_DIM,
           ACT_EMB + RWD_EMB:RNN_IN].set(p["Wo"])
  W = W.at[R_EMB + XC_ONE, 0:ACT_EMB].set(p["ba"][0])
  W = W.at[R_EMB + XC_ONE, ACT_EMB:ACT_EMB + RWD_EMB].set(p["br"][0])
  W = W.at[R_EMB + XC_ONE, ACT_EMB + RWD_EMB:RNN_IN].set(p["bo"][0])

  # GRU (PyTorch gate order r,z,n). r/z biases combined (bih+bhh); n keeps
  # bhh_n separate because it is multiplied by r.
  W = W.at[R_WIH:R_WIH + RNN_IN, 0:3 * H].set(p["Wih"])
  W = W.at[R_WHH:R_WHH + H, 0:3 * H].set(p["Whh"])
  W = W.at[R_BRZN, 0:2 * H].set(p["bih"][0, 0:2 * H] + p["bhh"][0, 0:2 * H])
  W = W.at[R_BRZN, 2 * H:3 * H].set(p["bih"][0, 2 * H:])
  W = W.at[R_BHHN, 0:H].set(p["bhh"][0, 2 * H:])

  # Twin-Q heads fused: layer-1 split (hidden part / action part + bias via the
  # ones column), layer-2 block-diag with a constant-1 extra column, layer-3
  # transposed with the final bias riding on that constant column.
  W = W.at[R_W1H:R_W1H + H, 0:Q_H1].set(p["q1W1"][:H])
  W = W.at[R_W1H:R_W1H + H, Q_H1:2 * Q_H1].set(p["q2W1"][:H])
  W = W.at[R_W1A + XC_CA:R_W1A + XC_CA + ACT_DIM, 0:Q_H1].set(p["q1W1"][H:])
  W = W.at[R_W1A + XC_CA:R_W1A + XC_CA + ACT_DIM, Q_H1:2 * Q_H1].set(p["q2W1"][H:])
  W = W.at[R_W1A + XC_ONE, 0:Q_H1].set(p["q1b1"][0])
  W = W.at[R_W1A + XC_ONE, Q_H1:2 * Q_H1].set(p["q2b1"][0])

  W = W.at[R_W2:R_W2 + Q_H1, 0:Q_H2].set(p["q1W2"])
  W = W.at[R_W2 + Q_H1:R_W2 + 2 * Q_H1, Q_H2:2 * Q_H2].set(p["q2W2"])
  W = W.at[R_B2, 0:Q_H2].set(p["q1b2"][0])
  W = W.at[R_B2, Q_H2:2 * Q_H2].set(p["q2b2"][0])
  W = W.at[R_B2, 2 * Q_H2].set(1.0)                    # constant-1 column of x2

  W = W.at[R_W3T, 0:Q_H2].set(p["q1W3"][:, 0])
  W = W.at[R_W3T, 2 * Q_H2].set(p["q1b3"][0, 0])
  W = W.at[R_W3T + 1, Q_H2:2 * Q_H2].set(p["q2W3"][:, 0])
  W = W.at[R_W3T + 1, 2 * Q_H2].set(p["q2b3"][0, 0])
  return W


# ------------------------------- wrapper -------------------------------------
def critic_rnn_forward(params, prev_actions, rewards, observs, current_actions,
                       block_t=None, batch_blocks=1):
  T, B, _ = prev_actions.shape
  assert rewards.shape == (T, B, 1)
  assert observs.shape == (T, B, OBS_DIM)
  assert current_actions.shape == (T, B, ACT_DIM)
  assert B % batch_blocks == 0
  Bc = B // batch_blocks
  assert Bc % 8 == 0, "per-core batch must be a multiple of 8 (f32 sublanes)"
  TT = T if block_t is None else block_t
  assert T % TT == 0
  n_blk = T // TT
  blk_rows = TT * Bc
  # Lane-dense transposed output blocks need a 128-aligned last dim when the
  # grid has more than one time block.
  assert n_blk == 1 or blk_rows % 128 == 0, \
      "multi time-block runs require (block_t * per-core batch) % 128 == 0"

  # Merged, lane-padded input: [prev_a | reward | obs | cur_a | 1 | 0pad].
  ones = jnp.ones((T, B, 1), jnp.float32)
  zpad = jnp.zeros((T, B, 1), jnp.float32)
  x = jnp.concatenate(
      [prev_actions, rewards, observs, current_actions, ones, zpad], axis=-1)
  assert x.shape[-1] == X_FEAT
  # (T, B, F) -> (batch_blocks, T*Bc, F): independent sequences per batch block.
  x = (x.reshape(T, batch_blocks, Bc, X_FEAT)
        .transpose(1, 0, 2, 3)
        .reshape(batch_blocks, T * Bc, X_FEAT))

  w_slab = _pack_weights(params)

  grid_spec = pltpu.PrefetchScalarGridSpec(
      num_scalar_prefetch=0,
      grid=(batch_blocks, n_blk),          # (parallel batch, sequential time)
      in_specs=[
          pl.BlockSpec((None, blk_rows, X_FEAT), lambda bc, tb: (bc, tb, 0)),
          pl.BlockSpec((SLAB_ROWS, SLAB_COLS), lambda bc, tb: (0, 0)),
      ],
      out_specs=pl.BlockSpec((None, NQ, blk_rows), lambda bc, tb: (bc, 0, tb)),
      scratch_shapes=[
          pltpu.VMEM((Bc, HIDDEN), jnp.float32),   # GRU hidden-state carry
      ],
  )

  kernel = functools.partial(_critic_rnn_kernel, tt=TT, nb=Bc)
  out = pl.pallas_call(
      kernel,
      grid_spec=grid_spec,
      out_shape=jax.ShapeDtypeStruct((batch_blocks, NQ, T * Bc), jnp.float32),
      compiler_params=pltpu.CompilerParams(
          dimension_semantics=("parallel", "arbitrary"),
          vmem_limit_bytes=48 * 1024 * 1024),   # explicit budget (< v7x 64 MiB)
  )(x, w_slab)

  # (batch_blocks, NQ, T*Bc) -> (T, B, NQ)
  out = (out.reshape(batch_blocks, NQ, T, Bc)
            .transpose(2, 0, 3, 1)
            .reshape(T, B, NQ))
  return out[..., 0:1], out[..., 1:2]


# ----------------------- deterministic parameter init -----------------------
def init_params(key):
  def dense(k, fan_in, fan_out):
    kw, kb = jax.random.split(k)
    w = jax.random.normal(kw, (fan_in, fan_out), jnp.float32) * (
        0.4 / jnp.sqrt(jnp.float32(fan_in)))
    b = jax.random.normal(kb, (1, fan_out), jnp.float32) * 0.01
    return w, b

  keys = jax.random.split(key, 11)
  p = {}
  p["Wa"], p["ba"] = dense(keys[0], ACT_DIM, ACT_EMB)
  p["Wr"], p["br"] = dense(keys[1], 1, RWD_EMB)
  p["Wo"], p["bo"] = dense(keys[2], OBS_DIM, OBS_EMB)
  p["Wih"], p["bih"] = dense(keys[3], RNN_IN, 3 * HIDDEN)   # gate order r,z,n
  p["Whh"], p["bhh"] = dense(keys[4], HIDDEN, 3 * HIDDEN)
  for pre, k0, k1, k2 in (("q1", keys[5], keys[6], keys[7]),
                          ("q2", keys[8], keys[9], keys[10])):
    p[pre + "W1"], p[pre + "b1"] = dense(k0, HIDDEN + ACT_DIM, Q_H1)
    p[pre + "W2"], p[pre + "b2"] = dense(k1, Q_H1, Q_H2)
    p[pre + "W3"], p[pre + "b3"] = dense(k2, Q_H2, 1)
  return p


# --------------------------- pure-JAX reference -----------------------------
def reference_forward(p, pa, rw, ob, ca):
  relu = jax.nn.relu
  ea = relu(jnp.einsum("tbi,io->tbo", pa, p["Wa"]) + p["ba"])
  er = relu(jnp.einsum("tbi,io->tbo", rw, p["Wr"]) + p["br"])
  eo = relu(jnp.einsum("tbi,io->tbo", ob, p["Wo"]) + p["bo"])
  x = jnp.concatenate([ea, er, eo], axis=-1)

  T, B, _ = pa.shape
  H = HIDDEN
  h = jnp.zeros((B, H), jnp.float32)
  hs = []
  for t in range(T):
    gx = x[t] @ p["Wih"] + p["bih"]
    gh = h @ p["Whh"] + p["bhh"]
    r = jax.nn.sigmoid(gx[:, :H] + gh[:, :H])
    z = jax.nn.sigmoid(gx[:, H:2 * H] + gh[:, H:2 * H])
    n = jnp.tanh(gx[:, 2 * H:] + r * gh[:, 2 * H:])
    h = (1.0 - z) * n + z * h
    hs.append(h)
  hs = jnp.stack(hs)

  joint = jnp.concatenate([hs, ca], axis=-1)

  def qnet(pre):
    y = relu(jnp.einsum("tbi,io->tbo", joint, p[pre + "W1"]) + p[pre + "b1"])
    y = relu(jnp.einsum("tbi,io->tbo", y, p[pre + "W2"]) + p[pre + "b2"])
    return jnp.einsum("tbi,io->tbo", y, p[pre + "W3"]) + p[pre + "b3"]

  return qnet("q1"), qnet("q2")


def _check(q1, q2, q1_ref, q2_ref, T, B):
  assert q1.shape == (T, B, 1) and q2.shape == (T, B, 1)
  assert bool(jnp.all(jnp.isfinite(q1))) and bool(jnp.all(jnp.isfinite(q2)))
  assert jnp.allclose(q1, q1_ref, rtol=2e-3, atol=2e-3), "qf1 mismatch"
  assert jnp.allclose(q2, q2_ref, rtol=2e-3, atol=2e-3), "qf2 mismatch"


if __name__ == "__main__":
  key = jax.random.PRNGKey(0)
  keys = jax.random.split(key, 9)
  params = init_params(keys[0])

  # Config 1: single time block, 2 parallel batch blocks (exercises the
  # "parallel" grid axis used for v7x megacore sharding).
  T, B = 8, 16
  pa = jax.random.normal(keys[1], (T, B, ACT_DIM), jnp.float32)
  rw = jax.random.normal(keys[2], (T, B, 1), jnp.float32)
  ob = jax.random.normal(keys[3], (T, B, OBS_DIM), jnp.float32)
  ca = jax.random.normal(keys[4], (T, B, ACT_DIM), jnp.float32)
  q1, q2 = jax.block_until_ready(
      critic_rnn_forward(params, pa, rw, ob, ca, batch_blocks=2))
  q1_ref, q2_ref = reference_forward(params, pa, rw, ob, ca)
  _check(q1, q2, q1_ref, q2_ref, T, B)

  # Config 2: time-blocked path (2 time blocks of 16, blk_rows = 128) which
  # exercises the carried hidden state and the 128-lane-aligned output blocks.
  T2, B2 = 32, 8
  pa2 = jax.random.normal(keys[5], (T2, B2, ACT_DIM), jnp.float32)
  rw2 = jax.random.normal(keys[6], (T2, B2, 1), jnp.float32)
  ob2 = jax.random.normal(keys[7], (T2, B2, OBS_DIM), jnp.float32)
  ca2 = jax.random.normal(keys[8], (T2, B2, ACT_DIM), jnp.float32)
  q1b, q2b = jax.block_until_ready(
      critic_rnn_forward(params, pa2, rw2, ob2, ca2, block_t=16))
  q1b_ref, q2b_ref = reference_forward(params, pa2, rw2, ob2, ca2)
  _check(q1b, q2b, q1b_ref, q2b_ref, T2, B2)

  print("KERNEL_OK")
</pallas_src>

<mosaic_0001>
module attributes {stable_mosaic.version = 11 : i64} {
  func.func @_critic_rnn_kernel(%arg0: i32, %arg1: i32, %arg2: memref<1x64x24xf32, #tpu.memory_space<vmem>>, %arg3: memref<272x128xf32, #tpu.memory_space<vmem>>, %arg4: memref<1x2x64xf32, #tpu.memory_space<vmem>>, %arg5: memref<8x32xf32, #tpu.memory_space<vmem>>) attributes {dimension_semantics = [#tpu.dimension_semantics<parallel>, #tpu.dimension_semantics<arbitrary>], iteration_bounds = array<i64: 2, 1>, scalar_prefetch = 0 : i64, scratch_operands = 1 : i64, tpu.core_type = #tpu.core_type<tc>, window_params = [{transform_indices = @transform_0, window_bounds = array<i64: 1, 64, 24>}, {pipeline_mode = #tpu.pipeline_mode<synchronous>, transform_indices = @transform_1, window_bounds = array<i64: 272, 128>}, {transform_indices = @transform_2, window_bounds = array<i64: 1, 2, 64>}]} {
    %c0_i32 = arith.constant 0 : i32
    %0 = arith.cmpi eq, %arg1, %c0_i32 : i32
    %1 = arith.extui %0 : i1 to i32
    %c0_i32_0 = arith.constant 0 : i32
    %2 = arith.cmpi ne, %1, %c0_i32_0 : i32
    scf.if %2 {
      %cst_53 = arith.constant 0.000000e+00 : f32
      %231 = vector.broadcast %cst_53 : f32 to vector<8x32xf32>
      %c0_54 = arith.constant 0 : index
      %c0_55 = arith.constant 0 : index
      %232 = vector.load %arg5[%c0_54, %c0_55] : memref<8x32xf32, #tpu.memory_space<vmem>>, vector<8x32xf32>
      tpu.vector_store %arg5[%c0_54, %c0_55], %231 {strides = array<i32>} : memref<8x32xf32, #tpu.memory_space<vmem>>, vector<8x32xf32>,
    } else {
    }
    %c0 = arith.constant 0 : index
    %c0_1 = arith.constant 0 : index
    %3 = vector.load %arg3[%c0, %c0_1] : memref<272x128xf32, #tpu.memory_space<vmem>>, vector<24x64xf32>
    %c24 = arith.constant 24 : index
    %c0_2 = arith.constant 0 : index
    %4 = vector.load %arg3[%c24, %c0_2] : memref<272x128xf32, #tpu.memory_space<vmem>>, vector<64x96xf32>
    %c88 = arith.constant 88 : index
    %c0_3 = arith.constant 0 : index
    %5 = vector.load %arg3[%c88, %c0_3] : memref<272x128xf32, #tpu.memory_space<vmem>>, vector<32x96xf32>
    %c120 = arith.constant 120 : index
    %c0_4 = arith.constant 0 : index
    %6 = vector.load %arg3[%c120, %c0_4] : memref<272x128xf32, #tpu.memory_space<vmem>>, vector<32x64xf32>
    %c152 = arith.constant 152 : index
    %c0_5 = arith.constant 0 : index
    %7 = vector.load %arg3[%c152, %c0_5] : memref<272x128xf32, #tpu.memory_space<vmem>>, vector<24x64xf32>
    %c176 = arith.constant 176 : index
    %c0_6 = arith.constant 0 : index
    %8 = vector.load %arg3[%c176, %c0_6] : memref<272x128xf32, #tpu.memory_space<vmem>>, vector<64x65xf32>
    %c240 = arith.constant 240 : index
    %c0_7 = arith.constant 0 : index
    %9 = vector.load %arg3[%c240, %c0_7] : memref<272x128xf32, #tpu.memory_space<vmem>>, vector<8x65xf32>
    %c248 = arith.constant 248 : index
    %c0_8 = arith.constant 0 : index
    %10 = vector.load %arg3[%c248, %c0_8] : memref<272x128xf32, #tpu.memory_space<vmem>>, vector<1x96xf32>
    %c256 = arith.constant 256 : index
    %c0_9 = arith.constant 0 : index
    %11 = vector.load %arg3[%c256, %c0_9] : memref<272x128xf32, #tpu.memory_space<vmem>>, vector<1x32xf32>
    %c264 = arith.constant 264 : index
    %c0_10 = arith.constant 0 : index
    %12 = vector.load %arg3[%c264, %c0_10] : memref<272x128xf32, #tpu.memory_space<vmem>>, vector<1x65xf32>
    %c0_11 = arith.constant 0 : index
    %c0_12 = arith.constant 0 : index
    %c0_13 = arith.constant 0 : index
    %13 = vector.load %arg2[%c0_11, %c0_12, %c0_13] : memref<1x64x24xf32, #tpu.memory_space<vmem>>, vector<1x64x24xf32>
    %14 = vector.shape_cast %13 : vector<1x64x24xf32> to vector<64x24xf32>
    %cst = arith.constant dense<0.000000e+00> : vector<64x64xf32>
    %15 = tpu.matmul %14, %3, %cst {dimension_numbers = #tpu.dot_dimension_numbers<[1], [0], [0], [1], [0, 0, 1, 1], [], []>} : vector<64x24xf32>, vector<24x64xf32>, vector<64x64xf32> -> vector<64x64xf32>
    %cst_14 = arith.constant 0.000000e+00 : f32
    %16 = vector.broadcast %cst_14 : f32 to vector<64x64xf32>
    %17 = arith.maximumf %15, %16 : vector<64x64xf32>
    %cst_15 = arith.constant dense<0.000000e+00> : vector<64x96xf32>
    %18 = tpu.matmul %17, %4, %cst_15 {dimension_numbers = #tpu.dot_dimension_numbers<[1], [0], [0], [1], [0, 0, 1, 1], [], []>} : vector<64x64xf32>, vector<64x96xf32>, vector<64x96xf32> -> vector<64x96xf32>
    %19 = vector.broadcast %10 : vector<1x96xf32> to vector<64x96xf32>
    %20 = arith.addf %18, %19 : vector<64x96xf32>
    %c0_16 = arith.constant 0 : index
    %c0_17 = arith.constant 0 : index
    %21 = vector.load %arg5[%c0_16, %c0_17] : memref<8x32xf32, #tpu.memory_space<vmem>>, vector<8x32xf32>
    %22 = vector.extract_strided_slice %20 {offsets = [0, 0], sizes = [8, 96], strides = [1, 1]} : vector<64x96xf32> to vector<8x96xf32>
    %cst_18 = arith.constant dense<0.000000e+00> : vector<8x96xf32>
    %23 = tpu.matmul %21, %5, %cst_18 {dimension_numbers = #tpu.dot_dimension_numbers<[1], [0], [0], [1], [0, 0, 1, 1], [], []>} : vector<8x32xf32>, vector<32x96xf32>, vector<8x96xf32> -> vector<8x96xf32>
    %24 = vector.extract_strided_slice %22 {offsets = [0, 0], sizes = [8, 64], strides = [1, 1]} : vector<8x96xf32> to vector<8x64xf32>
    %25 = vector.extract_strided_slice %23 {offsets = [0, 0], sizes = [8, 64], strides = [1, 1]} : vector<8x96xf32> to vector<8x64xf32>
    %26 = arith.addf %24, %25 : vector<8x64xf32>
    %27 = arith.negf %26 : vector<8x64xf32>
    %28 = math.exp %27 : vector<8x64xf32>
    %cst_19 = arith.constant 1.000000e+00 : f32
    %29 = vector.broadcast %cst_19 : f32 to vector<8x64xf32>
    %30 = arith.addf %29, %28 : vector<8x64xf32>
    %31 = arith.divf %29, %30 : vector<8x64xf32>
    %32 = vector.extract_strided_slice %31 {offsets = [0, 0], sizes = [8, 32], strides = [1, 1]} : vector<8x64xf32> to vector<8x32xf32>
    %33 = vector.extract_strided_slice %31 {offsets = [0, 32], sizes = [8, 32], strides = [1, 1]} : vector<8x64xf32> to vector<8x32xf32>
    %34 = vector.extract_strided_slice %22 {offsets = [0, 64], sizes = [8, 32], strides = [1, 1]} : vector<8x96xf32> to vector<8x32xf32>
    %35 = vector.extract_strided_slice %23 {offsets = [0, 64], sizes = [8, 32], strides = [1, 1]} : vector<8x96xf32> to vector<8x32xf32>
    %36 = vector.broadcast %11 : vector<1x32xf32> to vector<8x32xf32>
    %37 = arith.addf %35, %36 : vector<8x32xf32>
    %38 = arith.mulf %32, %37 : vector<8x32xf32>
    %39 = arith.addf %34, %38 : vector<8x32xf32>
    %40 = math.tanh %39 : vector<8x32xf32>
    %cst_20 = arith.constant 1.000000e+00 : f32
    %41 = vector.broadcast %cst_20 : f32 to vector<8x32xf32>
    %42 = arith.subf %41, %33 : vector<8x32xf32>
    %43 = arith.mulf %42, %40 : vector<8x32xf32>
    %44 = arith.mulf %33, %21 : vector<8x32xf32>
    %45 = arith.addf %43, %44 : vector<8x32xf32>
    %46 = vector.extract_strided_slice %20 {offsets = [8, 0], sizes = [8, 96], strides = [1, 1]} : vector<64x96xf32> to vector<8x96xf32>
    %cst_21 = arith.constant dense<0.000000e+00> : vector<8x96xf32>
    %47 = tpu.matmul %45, %5, %cst_21 {dimension_numbers = #tpu.dot_dimension_numbers<[1], [0], [0], [1], [0, 0, 1, 1], [], []>} : vector<8x32xf32>, vector<32x96xf32>, vector<8x96xf32> -> vector<8x96xf32>
    %48 = vector.extract_strided_slice %46 {offsets = [0, 0], sizes = [8, 64], strides = [1, 1]} : vector<8x96xf32> to vector<8x64xf32>
    %49 = vector.extract_strided_slice %47 {offsets = [0, 0], sizes = [8, 64], strides = [1, 1]} : vector<8x96xf32> to vector<8x64xf32>
    %50 = arith.addf %48, %49 : vector<8x64xf32>
    %51 = arith.negf %50 : vector<8x64xf32>
    %52 = math.exp %51 : vector<8x64xf32>
    %cst_22 = arith.constant 1.000000e+00 : f32
    %53 = vector.broadcast %cst_22 : f32 to vector<8x64xf32>
    %54 = arith.addf %53, %52 : vector<8x64xf32>
    %55 = arith.divf %53, %54 : vector<8x64xf32>
    %56 = vector.extract_strided_slice %55 {offsets = [0, 0], sizes = [8, 32], strides = [1, 1]} : vector<8x64xf32> to vector<8x32xf32>
    %57 = vector.extract_strided_slice %55 {offsets = [0, 32], sizes = [8, 32], strides = [1, 1]} : vector<8x64xf32> to vector<8x32xf32>
    %58 = vector.extract_strided_slice %46 {offsets = [0, 64], sizes = [8, 32], strides = [1, 1]} : vector<8x96xf32> to vector<8x32xf32>
    %59 = vector.extract_strided_slice %47 {offsets = [0, 64], sizes = [8, 32], strides = [1, 1]} : vector<8x96xf32> to vector<8x32xf32>
    %60 = vector.broadcast %11 : vector<1x32xf32> to vector<8x32xf32>
    %61 = arith.addf %59, %60 : vector<8x32xf32>
    %62 = arith.mulf %56, %61 : vector<8x32xf32>
    %63 = arith.addf %58, %62 : vector<8x32xf32>
    %64 = math.tanh %63 : vector<8x32xf32>
    %cst_23 = arith.constant 1.000000e+00 : f32
    %65 = vector.broadcast %cst_23 : f32 to vector<8x32xf32>
    %66 = arith.subf %65, %57 : vector<8x32xf32>
    %67 = arith.mulf %66, %64 : vector<8x32xf32>
    %68 = arith.mulf %57, %45 : vector<8x32xf32>
    %69 = arith.addf %67, %68 : vector<8x32xf32>
    %70 = vector.extract_strided_slice %20 {offsets = [16, 0], sizes = [8, 96], strides = [1, 1]} : vector<64x96xf32> to vector<8x96xf32>
    %cst_24 = arith.constant dense<0.000000e+00> : vector<8x96xf32>
    %71 = tpu.matmul %69, %5, %cst_24 {dimension_numbers = #tpu.dot_dimension_numbers<[1], [0], [0], [1], [0, 0, 1, 1], [], []>} : vector<8x32xf32>, vector<32x96xf32>, vector<8x96xf32> -> vector<8x96xf32>
    %72 = vector.extract_strided_slice %70 {offsets = [0, 0], sizes = [8, 64], strides = [1, 1]} : vector<8x96xf32> to vector<8x64xf32>
    %73 = vector.extract_strided_slice %71 {offsets = [0, 0], sizes = [8, 64], strides = [1, 1]} : vector<8x96xf32> to vector<8x64xf32>
    %74 = arith.addf %72, %73 : vector<8x64xf32>
    %75 = arith.negf %74 : vector<8x64xf32>
    %76 = math.exp %75 : vector<8x64xf32>
    %cst_25 = arith.constant 1.000000e+00 : f32
    %77 = vector.broadcast %cst_25 : f32 to vector<8x64xf32>
    %78 = arith.addf %77, %76 : vector<8x64xf32>
    %79 = arith.divf %77, %78 : vector<8x64xf32>
    %80 = vector.extract_strided_slice %79 {offsets = [0, 0], sizes = [8, 32], strides = [1, 1]} : vector<8x64xf32> to vector<8x32xf32>
    %81 = vector.extract_strided_slice %79 {offsets = [0, 32], sizes = [8, 32], strides = [1, 1]} : vector<8x64xf32> to vector<8x32xf32>
    %82 = vector.extract_strided_slice %70 {offsets = [0, 64], sizes = [8, 32], strides = [1, 1]} : vector<8x96xf32> to vector<8x32xf32>
    %83 = vector.extract_strided_slice %71 {offsets = [0, 64], sizes = [8, 32], strides = [1, 1]} : vector<8x96xf32> to vector<8x32xf32>
    %84 = vector.broadcast %11 : vector<1x32xf32> to vector<8x32xf32>
    %85 = arith.addf %83, %84 : vector<8x32xf32>
    %86 = arith.mulf %80, %85 : vector<8x32xf32>
    %87 = arith.addf %82, %86 : vector<8x32xf32>
    %88 = math.tanh %87 : vector<8x32xf32>
    %cst_26 = arith.constant 1.000000e+00 : f32
    %89 = vector.broadcast %cst_26 : f32 to vector<8x32xf32>
    %90 = arith.subf %89, %81 : vector<8x32xf32>
    %91 = arith.mulf %90, %88 : vector<8x32xf32>
    %92 = arith.mulf %81, %69 : vector<8x32xf32>
    %93 = arith.addf %91, %92 : vector<8x32xf32>
    %94 = vector.extract_strided_slice %20 {offsets = [24, 0], sizes = [8, 96], strides = [1, 1]} : vector<64x96xf32> to vector<8x96xf32>
    %cst_27 = arith.constant dense<0.000000e+00> : vector<8x96xf32>
    %95 = tpu.matmul %93, %5, %cst_27 {dimension_numbers = #tpu.dot_dimension_numbers<[1], [0], [0], [1], [0, 0, 1, 1], [], []>} : vector<8x32xf32>, vector<32x96xf32>, vector<8x96xf32> -> vector<8x96xf32>
    %96 = vector.extract_strided_slice %94 {offsets = [0, 0], sizes = [8, 64], strides = [1, 1]} : vector<8x96xf32> to vector<8x64xf32>
    %97 = vector.extract_strided_slice %95 {offsets = [0, 0], sizes = [8, 64], strides = [1, 1]} : vector<8x96xf32> to vector<8x64xf32>
    %98 = arith.addf %96, %97 : vector<8x64xf32>
    %99 = arith.negf %98 : vector<8x64xf32>
    %100 = math.exp %99 : vector<8x64xf32>
    %cst_28 = arith.constant 1.000000e+00 : f32
    %101 = vector.broadcast %cst_28 : f32 to vector<8x64xf32>
    %102 = arith.addf %101, %100 : vector<8x64xf32>
    %103 = arith.divf %101, %102 : vector<8x64xf32>
    %104 = vector.extract_strided_slice %103 {offsets = [0, 0], sizes = [8, 32], strides = [1, 1]} : vector<8x64xf32> to vector<8x32xf32>
    %105 = vector.extract_strided_slice %103 {offsets = [0, 32], sizes = [8, 32], strides = [1, 1]} : vector<8x64xf32> to vector<8x32xf32>
    %106 = vector.extract_strided_slice %94 {offsets = [0, 64], sizes = [8, 32], strides = [1, 1]} : vector<8x96xf32> to vector<8x32xf32>
    %107 = vector.extract_strided_slice %95 {offsets = [0, 64], sizes = [8, 32], strides = [1, 1]} : vector<8x96xf32> to vector<8x32xf32>
    %108 = vector.broadcast %11 : vector<1x32xf32> to vector<8x32xf32>
    %109 = arith.addf %107, %108 : vector<8x32xf32>
    %110 = arith.mulf %104, %109 : vector<8x32xf32>
    %111 = arith.addf %106, %110 : vector<8x32xf32>
    %112 = math.tanh %111 : vector<8x32xf32>
    %cst_29 = arith.constant 1.000000e+00 : f32
    %113 = vector.broadcast %cst_29 : f32 to vector<8x32xf32>
    %114 = arith.subf %113, %105 : vector<8x32xf32>
    %115 = arith.mulf %114, %112 : vector<8x32xf32>
    %116 = arith.mulf %105, %93 : vector<8x32xf32>
    %117 = arith.addf %115, %116 : vector<8x32xf32>
    %118 = vector.extract_strided_slice %20 {offsets = [32, 0], sizes = [8, 96], strides = [1, 1]} : vector<64x96xf32> to vector<8x96xf32>
    %cst_30 = arith.constant dense<0.000000e+00> : vector<8x96xf32>
    %119 = tpu.matmul %117, %5, %cst_30 {dimension_numbers = #tpu.dot_dimension_numbers<[1], [0], [0], [1], [0, 0, 1, 1], [], []>} : vector<8x32xf32>, vector<32x96xf32>, vector<8x96xf32> -> vector<8x96xf32>
    %120 = vector.extract_strided_slice %118 {offsets = [0, 0], sizes = [8, 64], strides = [1, 1]} : vector<8x96xf32> to vector<8x64xf32>
    %121 = vector.extract_strided_slice %119 {offsets = [0, 0], sizes = [8, 64], strides = [1, 1]} : vector<8x96xf32> to vector<8x64xf32>
    %122 = arith.addf %120, %121 : vector<8x64xf32>
    %123 = arith.negf %122 : vector<8x64xf32>
    %124 = math.exp %123 : vector<8x64xf32>
    %cst_31 = arith.constant 1.000000e+00 : f32
    %125 = vector.broadcast %cst_31 : f32 to vector<8x64xf32>
    %126 = arith.addf %125, %124 : vector<8x64xf32>
    %127 = arith.divf %125, %126 : vector<8x64xf32>
    %128 = vector.extract_strided_slice %127 {offsets = [0, 0], sizes = [8, 32], strides = [1, 1]} : vector<8x64xf32> to vector<8x32xf32>
    %129 = vector.extract_strided_slice %127 {offsets = [0, 32], sizes = [8, 32], strides = [1, 1]} : vector<8x64xf32> to vector<8x32xf32>
    %130 = vector.extract_strided_slice %118 {offsets = [0, 64], sizes = [8, 32], strides = [1, 1]} : vector<8x96xf32> to vector<8x32xf32>
    %131 = vector.extract_strided_slice %119 {offsets = [0, 64], sizes = [8, 32], strides = [1, 1]} : vector<8x96xf32> to vector<8x32xf32>
    %132 = vector.broadcast %11 : vector<1x32xf32> to vector<8x32xf32>
    %133 = arith.addf %131, %132 : vector<8x32xf32>
    %134 = arith.mulf %128, %133 : vector<8x32xf32>
    %135 = arith.addf %130, %134 : vector<8x32xf32>
    %136 = math.tanh %135 : vector<8x32xf32>
    %cst_32 = arith.constant 1.000000e+00 : f32
    %137 = vector.broadcast %cst_32 : f32 to vector<8x32xf32>
    %138 = arith.subf %137, %129 : vector<8x32xf32>
    %139 = arith.mulf %138, %136 : vector<8x32xf32>
    %140 = arith.mulf %129, %117 : vector<8x32xf32>
    %141 = arith.addf %139, %140 : vector<8x32xf32>
    %142 = vector.extract_strided_slice %20 {offsets = [40, 0], sizes = [8, 96], strides = [1, 1]} : vector<64x96xf32> to vector<8x96xf32>
    %cst_33 = arith.constant dense<0.000000e+00> : vector<8x96xf32>
    %143 = tpu.matmul %141, %5, %cst_33 {dimension_numbers = #tpu.dot_dimension_numbers<[1], [0], [0], [1], [0, 0, 1, 1], [], []>} : vector<8x32xf32>, vector<32x96xf32>, vector<8x96xf32> -> vector<8x96xf32>
    %144 = vector.extract_strided_slice %142 {offsets = [0, 0], sizes = [8, 64], strides = [1, 1]} : vector<8x96xf32> to vector<8x64xf32>
    %145 = vector.extract_strided_slice %143 {offsets = [0, 0], sizes = [8, 64], strides = [1, 1]} : vector<8x96xf32> to vector<8x64xf32>
    %146 = arith.addf %144, %145 : vector<8x64xf32>
    %147 = arith.negf %146 : vector<8x64xf32>
    %148 = math.exp %147 : vector<8x64xf32>
    %cst_34 = arith.constant 1.000000e+00 : f32
    %149 = vector.broadcast %cst_34 : f32 to vector<8x64xf32>
    %150 = arith.addf %149, %148 : vector<8x64xf32>
    %151 = arith.divf %149, %150 : vector<8x64xf32>
    %152 = vector.extract_strided_slice %151 {offsets = [0, 0], sizes = [8, 32], strides = [1, 1]} : vector<8x64xf32> to vector<8x32xf32>
    %153 = vector.extract_strided_slice %151 {offsets = [0, 32], sizes = [8, 32], strides = [1, 1]} : vector<8x64xf32> to vector<8x32xf32>
    %154 = vector.extract_strided_slice %142 {offsets = [0, 64], sizes = [8, 32], strides = [1, 1]} : vector<8x96xf32> to vector<8x32xf32>
    %155 = vector.extract_strided_slice %143 {offsets = [0, 64], sizes = [8, 32], strides = [1, 1]} : vector<8x96xf32> to vector<8x32xf32>
    %156 = vector.broadcast %11 : vector<1x32xf32> to vector<8x32xf32>
    %157 = arith.addf %155, %156 : vector<8x32xf32>
    %158 = arith.mulf %152, %157 : vector<8x32xf32>
    %159 = arith.addf %154, %158 : vector<8x32xf32>
    %160 = math.tanh %159 : vector<8x32xf32>
    %cst_35 = arith.constant 1.000000e+00 : f32
    %161 = vector.broadcast %cst_35 : f32 to vector<8x32xf32>
    %162 = arith.subf %161, %153 : vector<8x32xf32>
    %163 = arith.mulf %162, %160 : vector<8x32xf32>
    %164 = arith.mulf %153, %141 : vector<8x32xf32>
    %165 = arith.addf %163, %164 : vector<8x32xf32>
    %166 = vector.extract_strided_slice %20 {offsets = [48, 0], sizes = [8, 96], strides = [1, 1]} : vector<64x96xf32> to vector<8x96xf32>
    %cst_36 = arith.constant dense<0.000000e+00> : vector<8x96xf32>
    %167 = tpu.matmul %165, %5, %cst_36 {dimension_numbers = #tpu.dot_dimension_numbers<[1], [0], [0], [1], [0, 0, 1, 1], [], []>} : vector<8x32xf32>, vector<32x96xf32>, vector<8x96xf32> -> vector<8x96xf32>
    %168 = vector.extract_strided_slice %166 {offsets = [0, 0], sizes = [8, 64], strides = [1, 1]} : vector<8x96xf32> to vector<8x64xf32>
    %169 = vector.extract_strided_slice %167 {offsets = [0, 0], sizes = [8, 64], strides = [1, 1]} : vector<8x96xf32> to vector<8x64xf32>
    %170 = arith.addf %168, %169 : vector<8x64xf32>
    %171 = arith.negf %170 : vector<8x64xf32>
    %172 = math.exp %171 : vector<8x64xf32>
    %cst_37 = arith.constant 1.000000e+00 : f32
    %173 = vector.broadcast %cst_37 : f32 to vector<8x64xf32>
    %174 = arith.addf %173, %172 : vector<8x64xf32>
    %175 = arith.divf %173, %174 : vector<8x64xf32>
    %176 = vector.extract_strided_slice %175 {offsets = [0, 0], sizes = [8, 32], strides = [1, 1]} : vector<8x64xf32> to vector<8x32xf32>
    %177 = vector.extract_strided_slice %175 {offsets = [0, 32], sizes = [8, 32], strides = [1, 1]} : vector<8x64xf32> to vector<8x32xf32>
    %178 = vector.extract_strided_slice %166 {offsets = [0, 64], sizes = [8, 32], strides = [1, 1]} : vector<8x96xf32> to vector<8x32xf32>
    %179 = vector.extract_strided_slice %167 {offsets = [0, 64], sizes = [8, 32], strides = [1, 1]} : vector<8x96xf32> to vector<8x32xf32>
    %180 = vector.broadcast %11 : vector<1x32xf32> to vector<8x32xf32>
    %181 = arith.addf %179, %180 : vector<8x32xf32>
    %182 = arith.mulf %176, %181 : vector<8x32xf32>
    %183 = arith.addf %178, %182 : vector<8x32xf32>
    %184 = math.tanh %183 : vector<8x32xf32>
    %cst_38 = arith.constant 1.000000e+00 : f32
    %185 = vector.broadcast %cst_38 : f32 to vector<8x32xf32>
    %186 = arith.subf %185, %177 : vector<8x32xf32>
    %187 = arith.mulf %186, %184 : vector<8x32xf32>
    %188 = arith.mulf %177, %165 : vector<8x32xf32>
    %189 = arith.addf %187, %188 : vector<8x32xf32>
    %190 = vector.extract_strided_slice %20 {offsets = [56, 0], sizes = [8, 96], strides = [1, 1]} : vector<64x96xf32> to vector<8x96xf32>
    %cst_39 = arith.constant dense<0.000000e+00> : vector<8x96xf32>
    %191 = tpu.matmul %189, %5, %cst_39 {dimension_numbers = #tpu.dot_dimension_numbers<[1], [0], [0], [1], [0, 0, 1, 1], [], []>} : vector<8x32xf32>, vector<32x96xf32>, vector<8x96xf32> -> vector<8x96xf32>
    %192 = vector.extract_strided_slice %190 {offsets = [0, 0], sizes = [8, 64], strides = [1, 1]} : vector<8x96xf32> to vector<8x64xf32>
    %193 = vector.extract_strided_slice %191 {offsets = [0, 0], sizes = [8, 64], strides = [1, 1]} : vector<8x96xf32> to vector<8x64xf32>
    %194 = arith.addf %192, %193 : vector<8x64xf32>
    %195 = arith.negf %194 : vector<8x64xf32>
    %196 = math.exp %195 : vector<8x64xf32>
    %cst_40 = arith.constant 1.000000e+00 : f32
    %197 = vector.broadcast %cst_40 : f32 to vector<8x64xf32>
    %198 = arith.addf %197, %196 : vector<8x64xf32>
    %199 = arith.divf %197, %198 : vector<8x64xf32>
    %200 = vector.extract_strided_slice %199 {offsets = [0, 0], sizes = [8, 32], strides = [1, 1]} : vector<8x64xf32> to vector<8x32xf32>
    %201 = vector.extract_strided_slice %199 {offsets = [0, 32], sizes = [8, 32], strides = [1, 1]} : vector<8x64xf32> to vector<8x32xf32>
    %202 = vector.extract_strided_slice %190 {offsets = [0, 64], sizes = [8, 32], strides = [1, 1]} : vector<8x96xf32> to vector<8x32xf32>
    %203 = vector.extract_strided_slice %191 {offsets = [0, 64], sizes = [8, 32], strides = [1, 1]} : vector<8x96xf32> to vector<8x32xf32>
    %204 = vector.broadcast %11 : vector<1x32xf32> to vector<8x32xf32>
    %205 = arith.addf %203, %204 : vector<8x32xf32>
    %206 = arith.mulf %200, %205 : vector<8x32xf32>
    %207 = arith.addf %202, %206 : vector<8x32xf32>
    %208 = math.tanh %207 : vector<8x32xf32>
    %cst_41 = arith.constant 1.000000e+00 : f32
    %209 = vector.broadcast %cst_41 : f32 to vector<8x32xf32>
    %210 = arith.subf %209, %201 : vector<8x32xf32>
    %211 = arith.mulf %210, %208 : vector<8x32xf32>
    %212 = arith.mulf %201, %189 : vector<8x32xf32>
    %213 = arith.addf %211, %212 : vector<8x32xf32>
    %c0_42 = arith.constant 0 : index
    %c0_43 = arith.constant 0 : index
    %214 = vector.load %arg5[%c0_42, %c0_43] : memref<8x32xf32, #tpu.memory_space<vmem>>, vector<8x32xf32>
    tpu.vector_store %arg5[%c0_42, %c0_43], %213 {strides = array<i32>} : memref<8x32xf32, #tpu.memory_space<vmem>>, vector<8x32xf32>,
    %215 = tpu.concatenate %45, %69, %93, %117, %141, %165, %189, %213 in 0 : vector<8x32xf32>, vector<8x32xf32>, vector<8x32xf32>, vector<8x32xf32>, vector<8x32xf32>, vector<8x32xf32>, vector<8x32xf32>, vector<8x32xf32> -> vector<64x32xf32>
    %cst_44 = arith.constant dense<0.000000e+00> : vector<64x64xf32>
    %216 = tpu.matmul %215, %6, %cst_44 {dimension_numbers = #tpu.dot_dimension_numbers<[1], [0], [0], [1], [0, 0, 1, 1], [], []>} : vector<64x32xf32>, vector<32x64xf32>, vector<64x64xf32> -> vector<64x64xf32>
    %cst_45 = arith.constant dense<0.000000e+00> : vector<64x64xf32>
    %217 = tpu.matmul %14, %7, %cst_45 {dimension_numbers = #tpu.dot_dimension_numbers<[1], [0], [0], [1], [0, 0, 1, 1], [], []>} : vector<64x24xf32>, vector<24x64xf32>, vector<64x64xf32> -> vector<64x64xf32>
    %218 = arith.addf %216, %217 : vector<64x64xf32>
    %cst_46 = arith.constant 0.000000e+00 : f32
    %219 = vector.broadcast %cst_46 : f32 to vector<64x64xf32>
    %220 = arith.maximumf %218, %219 : vector<64x64xf32>
    %cst_47 = arith.constant dense<0.000000e+00> : vector<64x65xf32>
    %221 = tpu.matmul %220, %8, %cst_47 {dimension_numbers = #tpu.dot_dimension_numbers<[1], [0], [0], [1], [0, 0, 1, 1], [], []>} : vector<64x64xf32>, vector<64x65xf32>, vector<64x65xf32> -> vector<64x65xf32>
    %222 = vector.broadcast %12 : vector<1x65xf32> to vector<64x65xf32>
    %223 = arith.addf %221, %222 : vector<64x65xf32>
    %cst_48 = arith.constant 0.000000e+00 : f32
    %224 = vector.broadcast %cst_48 : f32 to vector<64x65xf32>
    %225 = arith.maximumf %223, %224 : vector<64x65xf32>
    %cst_49 = arith.constant dense<0.000000e+00> : vector<8x64xf32>
    %226 = tpu.matmul %9, %225, %cst_49 {dimension_numbers = #tpu.dot_dimension_numbers<[1], [1], [0], [0], [0, 0, 1, 0], [], []>} : vector<8x65xf32>, vector<64x65xf32>, vector<8x64xf32> -> vector<8x64xf32>
    %227 = vector.extract_strided_slice %226 {offsets = [0, 0], sizes = [2, 64], strides = [1, 1]} : vector<8x64xf32> to vector<2x64xf32>
    %c0_50 = arith.constant 0 : index
    %c0_51 = arith.constant 0 : index
    %c0_52 = arith.constant 0 : index
    %228 = vector.load %arg4[%c0_50, %c0_51, %c0_52] : memref<1x2x64xf32, #tpu.memory_space<vmem>>, vector<1x2x64xf32>
    %229 = vector.shape_cast %228 : vector<1x2x64xf32> to vector<2x64xf32>
    %230 = vector.shape_cast %227 : vector<2x64xf32> to vector<1x2x64xf32>
    tpu.vector_store %arg4[%c0_50, %c0_51, %c0_52], %230 {strides = array<i32>} : memref<1x2x64xf32, #tpu.memory_space<vmem>>, vector<1x2x64xf32>,
    return
  }
  func.func @transform_0(%arg0: i32, %arg1: i32) -> (i32, i32, i32) {
    %c0_i32 = arith.constant 0 : i32
    %c0_i32_0 = arith.constant 0 : i32
    return %arg0, %arg1, %c0_i32 : i32, i32, i32
  }
  func.func @transform_1(%arg0: i32, %arg1: i32) -> (i32, i32) {
    %c0_i32 = arith.constant 0 : i32
    %c0_i32_0 = arith.constant 0 : i32
    %c0_i32_1 = arith.constant 0 : i32
    return %c0_i32, %c0_i32_0 : i32, i32
  }
  func.func @transform_2(%arg0: i32, %arg1: i32) -> (i32, i32, i32) {
    %c0_i32 = arith.constant 0 : i32
    %c0_i32_0 = arith.constant 0 : i32
    return %arg0, %c0_i32, %arg1 : i32, i32, i32
  }
}

</mosaic_0001>

<llo_original>
// kernel: tpu_custom_call.1
$region0: #{tpu_custom_call.1}
  #allocation0 [shape = 'u32[]', space=smem, size = 0x4, offset = 0x4, fixed_abs, tag = 'smem constant byte address 0x4 - core index']
  #allocation1 [shape = 'u32[144,128]{1,0:T(1,128)}', space=vmem, size = 0x12000, scoped, tag = 'internal scratch']
  #allocation2 [shape = 'f32[8,32]{1,0:T(8,128)}', space=vmem, size = 0x1000, scoped, tag = 'scratch operand']
  %s0 = inlined_call_operand.vmem [shape: f32[2,64,24], index: 0, kind: input, shape index: {}]
  %s1 = inlined_call_operand.hbm [shape: f32[272,128], index: 1, kind: input, shape index: {}]
  %s2 = inlined_call_operand.hbm [shape: f32[2,2,64], index: 2, kind: output, shape index: {}]
  %s3 = sld [smem:[#allocation0]]
  $region49: #{tpu_custom_call.1} parent=0
    _
  %s5 = ssub.s32 1, %s3
  %s6 = scalar_select 0, %s5, %s3
  $region1: #{tpu_custom_call.1} parent=0
    #allocation3 [shape = 'u8[139264]{0}', space=vmem, size = 0x22000, scoped, tag = 'input window, operand 1, single buffered']
    #allocation4 [shape = 's32[2]{0}', space=sflag, size = 0x8, scoped, tag = 'scoped memory for tpu_custom_call.1']
    #allocation5 [shape = 's32[2]{0}', space=sflag, size = 0x8, scoped, tag = 'scoped memory for tpu_custom_call.1']
    #allocation6 [shape = 'u8[2048]{0}', space=vmem, size = 0x800, scoped, tag = 'output window, operand 0']
    %7 = vsyncpa [#allocation4], 0
    %8 = vsyncpa [#allocation5], 0
    %s9 = scalar_lea.sflag [#allocation5], 1
    %10 = vsyncpa %s9, 0
    loop: start=0, step=1, limit=4
    $region2: #{tpu_custom_call.1} parent=1 // loop_pre_header
      _
    $region3: #{tpu_custom_call.1} parent=1 // loop_header
      %s12 = sphi 0, %s16
      %p13 = scmp.ge.s32.totalorder %s12, 4
      %s19 = sphi 0, %s31
      %s20 = sphi 0, %s27
      %s21 = sphi 0, %s19
      %s22 = sphi 0, %s20
      %s23 = sphi 0, %s21
      %s24 = sphi 0, %s22
      %s36 = sphi 0, %s38
      %s39 = sphi 0, %s36
      %s40 = sphi 0, %s39
      %s56 = sphi 0, %s40
      %s60 = sphi 0, %s60
      %s62 = sphi 0, %s60
      %s63 = sphi 0, %s62
      %s77 = sphi 0, %s63
      %s85 = sphi 0, %s87
      %s88 = sphi 0, %s85
      %s89 = sphi 0, %s88
      %s105 = sphi 0, %s89
    $region4: #{tpu_custom_call.1} parent=1 // loop_header_branch
      %15 = sbr.rel (%p13) target = $region8
    $region5: #{tpu_custom_call.1} parent=1 // loop_body
      %s17 = ssub.s32 %s12, 1
      %s18 = ssub.s32 %s12, 2
      %s25 = sadd.s32 1, %s20
      %p26 = scmp.ge.s32.totalorder %s25, 1
      %s27 = scalar_select %p26, 0, %s25
      %s28 = sadd.s32 1, %s19
      %s29 = scalar_select %p26, %s28, %s19
      %p30 = scmp.ge.s32.totalorder %s29, 2
      %s31 = scalar_select %p30, 0, %s29
      %s32 = ssub.s32 %s19, %s31
      %s33 = ssub.s32 %s20, %s27
      %s34 = sor.u32 %s32, %s33
      %p35 = scmp.eq.s32.totalorder %s34, 0
      %s37 = sadd.s32 %s36, 1
      %s38 = scalar_select %p35, %s36, %s37
      %p41 = pneg %p35
      %p42 = scmp.eq.s32.totalorder %s12, 1
      %p43 = por %p41, %p42
      %p44 = scmp.ne.s32.totalorder %s36, %s39
      %p45 = scmp.eq.s32.totalorder %s12, 0
      %p46 = por %p44, %p45
      %p47 = scmp.ne.s32.totalorder %s36, %s39
      %p48 = scmp.eq.s32.totalorder %s17, 1
      %p49 = por %p47, %p48
      %p50 = scmp.ne.s32.totalorder %s39, %s40
      %p51 = scmp.eq.s32.totalorder %s17, 0
      %p52 = por %p50, %p51
      %p53 = scmp.ne.s32.totalorder %s39, %s40
      %p54 = scmp.eq.s32.totalorder %s18, 1
      %p55 = por %p53, %p54
      %p57 = scmp.ne.s32.totalorder %s40, %s56
      %p58 = scmp.eq.s32.totalorder %s18, 0
      %p59 = por %p57, %p58
      %s61 = sadd.s32 %s60, 1
      %p64 = scmp.eq.s32.totalorder %s12, 1
      %p65 = scmp.ne.s32.totalorder %s60, %s62
      %p66 = scmp.eq.s32.totalorder %s12, 0
      %p67 = por %p65, %p66
      %p68 = scmp.ne.s32.totalorder %s60, %s62
      %p69 = scmp.eq.s32.totalorder %s17, 1
      %p70 = por %p68, %p69
      %p71 = scmp.ne.s32.totalorder %s62, %s63
      %p72 = scmp.eq.s32.totalorder %s17, 0
      %p73 = por %p71, %p72
      %p74 = scmp.ne.s32.totalorder %s62, %s63
      %p75 = scmp.eq.s32.totalorder %s18, 1
      %p76 = por %p74, %p75
      %p78 = scmp.ne.s32.totalorder %s63, %s77
      %p79 = scmp.eq.s32.totalorder %s18, 0
      %p80 = por %p78, %p79
      %s81 = ssub.s32 %s19, %s31
      %s82 = ssub.s32 %s20, %s27
      %s83 = sor.u32 %s81, %s82
      %p84 = scmp.eq.s32.totalorder %s83, 0
      %s86 = sadd.s32 %s85, 1
      %s87 = scalar_select %p84, %s85, %s86
      %p90 = pneg %p84
      %p91 = scmp.eq.s32.totalorder %s12, 1
      %p92 = por %p90, %p91
      %p93 = scmp.ne.s32.totalorder %s85, %s88
      %p94 = scmp.eq.s32.totalorder %s12, 0
      %p95 = por %p93, %p94
      %p96 = scmp.ne.s32.totalorder %s85, %s88
      %p97 = scmp.eq.s32.totalorder %s17, 1
      %p98 = por %p96, %p97
      %p99 = scmp.ne.s32.totalorder %s88, %s89
      %p100 = scmp.eq.s32.totalorder %s17, 0
      %p101 = por %p99, %p100
      %p102 = scmp.ne.s32.totalorder %s88, %s89
      %p103 = scmp.eq.s32.totalorder %s18, 1
      %p104 = por %p102, %p103
      %p106 = scmp.ne.s32.totalorder %s89, %s105
      %p107 = scmp.eq.s32.totalorder %s18, 0
      %p108 = por %p106, %p107
      %p109 = scmp.le.s32.totalorder 1, %s12
      %p110 = scmp.lt.s32.totalorder %s12, 3
      %p111 = pnand %p109, %p110
      %p112 = pneg %p111
      // Predicated region
      $region9: #{tpu_custom_call.1} parent=5 // pred_check
        _
      $region10: #{tpu_custom_call.1} parent=5 // pred_check_branch
        %114 = sbr.rel (%p111) target = $region12
      $region11: #{tpu_custom_call.1} parent=5 // pred_region
        %s115 = ssub.s32 %s12, 1
        // Predicated region
        $region13: #{tpu_custom_call.1} parent=11 // pred_check
          %p116 = pneg %p73
        $region14: #{tpu_custom_call.1} parent=11 // pred_check_branch
          %118 = sbr.rel (%p116) target = $region16
        $region15: #{tpu_custom_call.1} parent=11 // pred_region
          %s120 = ssub.s32 4352, 4352
          %121 = vsyncadd [#allocation4], %s120
          %s122 = sshll.u32 [#allocation3], 4
          %s123 = int_to_ptr.vmem [resolvable:$true] %s122
          %128 = dma.hbm_to_vmem [thread:$0]  %s1, 4352, %s123, [#allocation4], 128, 128, 8
        $region16: #{tpu_custom_call.1} parent=11 // pred_fallthru
          _
      $region12: #{tpu_custom_call.1} parent=5 // pred_fallthru
        _
      %p129 = scmp.lt.s32.totalorder %s12, 2
      // Predicated region
      $region17: #{tpu_custom_call.1} parent=5 // pred_check
        %p130 = pneg %p129
      $region18: #{tpu_custom_call.1} parent=5 // pred_check_branch
        %132 = sbr.rel (%p130) target = $region20
      $region19: #{tpu_custom_call.1} parent=5 // pred_region
        // Predicated region
        $region21: #{tpu_custom_call.1} parent=19 // pred_check
          %p133 = pneg %p46
        $region22: #{tpu_custom_call.1} parent=19 // pred_check_branch
          %135 = sbr.rel (%p133) target = $region24
        $region23: #{tpu_custom_call.1} parent=19 // pred_region
          %s136 = smul.u32 8, %s20
          %p137 = scmp.lt.s32.totalorder %s19, 1
          %s138 = scalar_select %p137, %s19, 1
          %p139 = scmp.lt.s32.totalorder %s136, 7
          %s140 = scalar_select %p139, %s136, 7
          %s141 = smul.addr %s138, 8
          %s142 = sadd.s32 %s140, %s141
          %s143 = smul.addr %s142, 8
          %s144 = scalar_lea.vmem %s0, %s143
          %s145 = smul.u32 8, %s20
        $region24: #{tpu_custom_call.1} parent=19 // pred_fallthru
          _
      $region20: #{tpu_custom_call.1} parent=5 // pred_fallthru
        _
      %p146 = scmp.le.s32.totalorder 1, %s12
      %p147 = scmp.lt.s32.totalorder %s12, 3
      %p148 = pnand %p146, %p147
      %p149 = pneg %p148
      // Predicated region
      $region25: #{tpu_custom_call.1} parent=5 // pred_check
        _
      $region26: #{tpu_custom_call.1} parent=5 // pred_check_branch
        %151 = sbr.rel (%p148) target = $region28
      $region27: #{tpu_custom_call.1} parent=5 // pred_region
        %s152 = ssub.s32 %s12, 1
        // Predicated region
        $region29: #{tpu_custom_call.1} parent=27 // pred_check
          %p153 = pneg %p73
        $region30: #{tpu_custom_call.1} parent=27 // pred_check_branch
          %155 = sbr.rel (%p153) target = $region32
        $region31: #{tpu_custom_call.1} parent=27 // pred_region
          %156 = dma.done [#allocation4], 4352
        $region32: #{tpu_custom_call.1} parent=27 // pred_fallthru
          _
        %s157 = smul.u32 8, %s22
        %p158 = scmp.lt.s32.totalorder %s21, 1
        %s159 = scalar_select %p158, %s21, 1
        %p160 = scmp.lt.s32.totalorder %s157, 7
        %s161 = scalar_select %p160, %s157, 7
        %s162 = smul.addr %s159, 8
        %s163 = sadd.s32 %s161, %s162
        %s164 = smul.addr %s163, 8
        %s165 = scalar_lea.vmem %s0, %s164
        %p166 = pneg %p52
        %p167 = pneg %p49
        %p168 = pneg %p73
        %p169 = pneg %p70
        %p170 = pneg %p101
        %p171 = pneg %p98
        %s172 = sand.u32 %s88, 1
        %s173 = scalar_lea.sflag [#allocation5], %s172
        %s174 = sand.u32 %s88, 1
        %s175 = smul.addr %s174, 2
        %s176 = scalar_lea.vmem [#allocation6], %s175
        %s177 = smul.u32 8, %s22
        %p178 = scmp.lt.s32.totalorder %s21, 1
        %s179 = scalar_select %p178, %s21, 1
        %p180 = scmp.lt.s32.totalorder %s177, 7
        %s181 = scalar_select %p180, %s177, 7
        %s182 = smul.addr %s179, 8
        %s183 = sadd.s32 %s181, %s182
        %s184 = smul.addr %s183, 8
        %s185 = scalar_lea.vmem %s0, %s184
        %s186 = smul.u32 8, %s22
        %p187 = scmp.eq.s32.totalorder %s22, 0
        // Predicated region
        $region33: #{tpu_custom_call.1} parent=27 // pred_check
          %p188 = pneg %p187
        $region34: #{tpu_custom_call.1} parent=27 // pred_check_branch
          %190 = sbr.rel (%p188) target = $region36
        $region35: #{tpu_custom_call.1} parent=27 // pred_region
          %vm191 = vcmask 261120
          %192 = vst.msk [vmem:[#allocation2] sm:$0xff] %vm191, 0.0
        $region36: #{tpu_custom_call.1} parent=27 // pred_fallthru
          _
        %v193 = vld [vmem:[#allocation3] sm:$0xff]
        %v194 = vld [vmem:[#allocation3 + $0x8] sm:$0xff]
        %v195 = vld [vmem:[#allocation3 + $0x10] sm:$0xff]
        %v196 = vld [vmem:[#allocation3 + $0x18] sm:$0xff]
        %v197 = vld [vmem:[#allocation3 + $0x20] sm:$0xff]
        %v198 = vld [vmem:[#allocation3 + $0x28] sm:$0xff]
        %v199 = vld [vmem:[#allocation3 + $0x30] sm:$0xff]
        %v200 = vld [vmem:[#allocation3 + $0x38] sm:$0xff]
        %v201 = vld [vmem:[#allocation3 + $0x40] sm:$0xff]
        %v202 = vld [vmem:[#allocation3 + $0x48] sm:$0xff]
        %v203 = vld [vmem:[#allocation3 + $0x50] sm:$0xff]
        %v204 = vld [vmem:[#allocation3 + $0x58] sm:$0xff]
        %v205 = vld [vmem:[#allocation3 + $0x60] sm:$0xff]
        %v206 = vld [vmem:[#allocation3 + $0x68] sm:$0xff]
        %v207 = vld [vmem:[#allocation3 + $0x70] sm:$0xff]
        %v208 = vld [vmem:[#allocation3 + $0x78] sm:$0xff]
        %v209 = vld [vmem:[#allocation3 + $0x80] sm:$0xff]
        %v210 = vld [vmem:[#allocation3 + $0x88] sm:$0xff]
        %v211 = vld [vmem:[#allocation3 + $0x90] sm:$0xff]
        %v212 = vld [vmem:[#allocation3 + $0x98] sm:$0xff]
        %v213 = vld [vmem:[#allocation3 + $0xa0] sm:$0xff]
        %v214 = vld [vmem:[#allocation3 + $0xa8] sm:$0xff]
        %v215 = vld [vmem:[#allocation3 + $0xb0] sm:$0xff]
        %v216 = vld [vmem:[#allocation3 + $0xb8] sm:$0xff]
        %v217 = vld [vmem:[#allocation3 + $0xc0] sm:$0xff]
        %v218 = vld [vmem:[#allocation3 + $0xc8] sm:$0xff]
        %v219 = vld [vmem:[#allocation3 + $0xd0] sm:$0xff]
        %v220 = vld [vmem:[#allocation3 + $0xd8] sm:$0xff]
        %v221 = vld [vmem:[#allocation3 + $0xe0] sm:$0xff]
        %v222 = vld [vmem:[#allocation3 + $0xe8] sm:$0xff]
        %v223 = vld [vmem:[#allocation3 + $0xf0] sm:$0xff]
        %v224 = vld [vmem:[#allocation3 + $0xf8] sm:$0x1]
        %v225 = vld [vmem:[#allocation3 + $0x100] sm:$0x1]
        %v226 = vld [vmem:[#allocation3 + $0x108] sm:$0x1]
        %v227 = vld [vmem:[%s185] sm:$0xff]
        %v228 = vld [vmem:[%s185 + $0x8] sm:$0xff]
        %v229 = vld [vmem:[%s185 + $0x10] sm:$0xff]
        %v230 = vld [vmem:[%s185 + $0x18] sm:$0xff]
        %v231 = vld [vmem:[%s185 + $0x20] sm:$0xff]
        %v232 = vld [vmem:[%s185 + $0x28] sm:$0xff]
        %v233 = vld [vmem:[%s185 + $0x30] sm:$0xff]
        %v234 = vld [vmem:[%s185 + $0x38] sm:$0xff]
        %vm235 = vcmask 195584
        %v237 = vsel %vm235, %v227, 0
        %v240 = vsel %vm235, %v228, 0
        %v243 = vsel %vm235, %v229, 0
        %v246 = vsel %vm235, %v230, 0
        %v249 = vsel %vm235, %v231, 0
        %v252 = vsel %vm235, %v232, 0
        %v255 = vsel %vm235, %v233, 0
        %v258 = vsel %vm235, %v234, 0
        %260 = vmatprep.subr.mxu0 0.0
        %261 = vmatpush1.msra.mxu0 %v193
        %262 = vmatprep.subr.mxu0 0.0
        %263 = vmatpush1.msra.mxu0 %v194
        %264 = vmatprep.subr.mxu0 0.0
        %265 = vmatpush1.msra.mxu0 %v195
        %266 = vmatprep.subr.mxu0 0.0
        %267 = vmatpush1.msra.mxu0 0.0
        %268 = vmatprep.subr.mxu0 0.0
        %269 = vmatpush1.msra.mxu0 0.0
        %270 = vmatprep.subr.mxu0 0.0
        %271 = vmatpush1.msra.mxu0 0.0
        %272 = vmatprep.subr.mxu0 0.0
        %273 = vmatpush1.msra.mxu0 0.0
        %274 = vmatprep.subr.mxu0 0.0
        %275 = vmatpush1.msra.mxu0 0.0
        %276 = vmatprep.subr.mxu0 0.0
        %277 = vmatpush1.msra.mxu0 0.0
        %278 = vmatprep.subr.mxu0 0.0
        %279 = vmatpush1.msra.mxu0 0.0
        %280 = vmatprep.subr.mxu0 0.0
        %281 = vmatpush1.msra.mxu0 0.0
        %282 = vmatprep.subr.mxu0 0.0
        %283 = vmatpush1.msra.mxu0 0.0
        %284 = vmatprep.subr.mxu0 0.0
        %285 = vmatpush1.msra.mxu0 0.0
        %286 = vmatprep.subr.mxu0 0.0
        %287 = vmatpush1.msra.mxu0 0.0
        %288 = vmatprep.subr.mxu0 0.0
        %289 = vmatpush1.msra.mxu0 0.0
        %290 = vmatprep.subr.mxu0 0.0
        %291 = vmatpush1.msra.mxu0 0.0
        %292 = vmatprep.subr.mxu0 0.0
        %293 = vmatpush1.msra.mxu0 0.0
        %294 = vmatprep.subr.mxu0 0.0
        %295 = vmatpush1.msra.mxu0 0.0
        %296 = vmatprep.subr.mxu0 0.0
        %297 = vmatpush1.msra.mxu0 0.0
        %298 = vmatprep.subr.mxu0 0.0
        %299 = vmatpush1.msra.mxu0 0.0
        %300 = vmatprep.subr.mxu0 0.0
        %301 = vmatpush1.msra.mxu0 0.0
        %302 = vmatprep.subr.mxu0 0.0
        %303 = vmatpush1.msra.mxu0 0.0
        %304 = vmatprep.subr.mxu0 0.0
        %305 = vmatpush1.msra.mxu0 0.0
        %306 = vmatprep.subr.mxu0 0.0
        %307 = vmatpush1.msra.mxu0 0.0
        %308 = vmatprep.subr.mxu0 0.0
        %309 = vmatpush1.msra.mxu0 0.0
        %310 = vmatprep.subr.mxu0 0.0
        %311 = vmatpush1.msra.mxu0 0.0
        %312 = vmatprep.subr.mxu0 0.0
        %313 = vmatpush1.msra.mxu0 0.0
        %314 = vmatprep.subr.mxu0 0.0
        %315 = vmatpush1.msra.mxu0 0.0
        %316 = vmatprep.subr.mxu0 0.0
        %317 = vmatpush1.msra.mxu0 0.0
        %318 = vmatprep.subr.mxu0 0.0
        %319 = vmatpush1.msra.mxu0 0.0
        %320 = vmatprep.subr.mxu0 0.0
        %321 = vmatpush1.msra.mxu0 0.0
        %322 = vmatprep.subr.mxu0 0.0
        %323 = vmatpush1.msra.mxu0 0.0
        %324 = vmatprep.mubr.f32.mxu0 0.0
        %325 = vmatmul.mubr.f32.gmra.mrb[0].mxu0 %v237
        %v326 = vpop.f32.mrb[0].mxu0
        %v327 = vadd.f32 0.0, %v326
        %v328 = vpop.f32.mrb[0].mxu0
        %329 = vmatprep.mubr.f32.mxu0 0.0
        %330 = vmatmul.mubr.f32.gmra.mrb[0].mxu0 %v240
        %v331 = vpop.f32.mrb[0].mxu0
        %v332 = vadd.f32 0.0, %v331
        %v333 = vpop.f32.mrb[0].mxu0
        %334 = vmatprep.mubr.f32.mxu0 0.0
        %335 = vmatmul.mubr.f32.gmra.mrb[0].mxu0 %v243
        %v336 = vpop.f32.mrb[0].mxu0
        %v337 = vadd.f32 0.0, %v336
        %v338 = vpop.f32.mrb[0].mxu0
        %339 = vmatprep.mubr.f32.mxu0 0.0
        %340 = vmatmul.mubr.f32.gmra.mrb[0].mxu0 %v246
        %v341 = vpop.f32.mrb[0].mxu0
        %v342 = vadd.f32 0.0, %v341
        %v343 = vpop.f32.mrb[0].mxu0
        %344 = vmatprep.mubr.f32.mxu0 0.0
        %345 = vmatmul.mubr.f32.gmra.mrb[0].mxu0 %v249
        %v346 = vpop.f32.mrb[0].mxu0
        %v347 = vadd.f32 0.0, %v346
        %v348 = vpop.f32.mrb[0].mxu0
        %349 = vmatprep.mubr.f32.mxu0 0.0
        %350 = vmatmul.mubr.f32.gmra.mrb[0].mxu0 %v252
        %v351 = vpop.f32.mrb[0].mxu0
        %v352 = vadd.f32 0.0, %v351
        %v353 = vpop.f32.mrb[0].mxu0
        %354 = vmatprep.mubr.f32.mxu0 0.0
        %355 = vmatmul.mubr.f32.gmra.mrb[0].mxu0 %v255
        %v356 = vpop.f32.mrb[0].mxu0
        %v357 = vadd.f32 0.0, %v356
        %v358 = vpop.f32.mrb[0].mxu0
        %359 = vmatprep.mubr.f32.mxu0 0.0
        %360 = vmatmul.mubr.f32.gmra.mrb[0].mxu0 %v258
        %v361 = vpop.f32.mrb[0].mxu0
        %v362 = vadd.f32 0.0, %v361
        %v363 = vpop.f32.mrb[0].mxu0
        %364 = vdwg.mxu0
        %v365 = vmax.f32 %v327, 0.0
        %v366 = vmax.f32 %v332, 0.0
        %v367 = vmax.f32 %v337, 0.0
        %v368 = vmax.f32 %v342, 0.0
        %v369 = vmax.f32 %v347, 0.0
        %v370 = vmax.f32 %v352, 0.0
        %v371 = vmax.f32 %v357, 0.0
        %v372 = vmax.f32 %v362, 0.0
        %v373 = vlaneseq
        %v374 = vshrl.u32 %v373, 7
        %v375 = vsub.s32 0, %v374
        %v376 = vrot.slane %v224, %v375
        %vm377 = vcmask 523264
        %v379 = vsel %vm377, %v365, 0
        %v382 = vsel %vm377, %v366, 0
        %v385 = vsel %vm377, %v367, 0
        %v388 = vsel %vm377, %v368, 0
        %v391 = vsel %vm377, %v369, 0
        %v394 = vsel %vm377, %v370, 0
        %v397 = vsel %vm377, %v371, 0
        %v400 = vsel %vm377, %v372, 0
        %402 = vmatprep.subr.mxu0 0.0
        %403 = vmatpush1.msra.mxu0 %v196
        %404 = vmatprep.subr.mxu0 0.0
        %405 = vmatpush1.msra.mxu0 %v197
        %406 = vmatprep.subr.mxu0 0.0
        %407 = vmatpush1.msra.mxu0 %v198
        %408 = vmatprep.subr.mxu0 0.0
        %409 = vmatpush1.msra.mxu0 %v199
        %410 = vmatprep.subr.mxu0 0.0
        %411 = vmatpush1.msra.mxu0 %v200
        %412 = vmatprep.subr.mxu0 0.0
        %413 = vmatpush1.msra.mxu0 %v201
        %414 = vmatprep.subr.mxu0 0.0
        %415 = vmatpush1.msra.mxu0 %v202
        %416 = vmatprep.subr.mxu0 0.0
        %417 = vmatpush1.msra.mxu0 %v203
        %418 = vmatprep.subr.mxu0 0.0
        %419 = vmatpush1.msra.mxu0 0.0
        %420 = vmatprep.subr.mxu0 0.0
        %421 = vmatpush1.msra.mxu0 0.0
        %422 = vmatprep.subr.mxu0 0.0
        %423 = vmatpush1.msra.mxu0 0.0
        %424 = vmatprep.subr.mxu0 0.0
        %425 = vmatpush1.msra.mxu0 0.0
        %426 = vmatprep.subr.mxu0 0.0
        %427 = vmatpush1.msra.mxu0 0.0
        %428 = vmatprep.subr.mxu0 0.0
        %429 = vmatpush1.msra.mxu0 0.0
        %430 = vmatprep.subr.mxu0 0.0
        %431 = vmatpush1.msra.mxu0 0.0
        %432 = vmatprep.subr.mxu0 0.0
        %433 = vmatpush1.msra.mxu0 0.0
        %434 = vmatprep.subr.mxu0 0.0
        %435 = vmatpush1.msra.mxu0 0.0
        %436 = vmatprep.subr.mxu0 0.0
        %437 = vmatpush1.msra.mxu0 0.0
        %438 = vmatprep.subr.mxu0 0.0
        %439 = vmatpush1.msra.mxu0 0.0
        %440 = vmatprep.subr.mxu0 0.0
        %441 = vmatpush1.msra.mxu0 0.0
        %442 = vmatprep.subr.mxu0 0.0
        %443 = vmatpush1.msra.mxu0 0.0
        %444 = vmatprep.subr.mxu0 0.0
        %445 = vmatpush1.msra.mxu0 0.0
        %446 = vmatprep.subr.mxu0 0.0
        %447 = vmatpush1.msra.mxu0 0.0
        %448 = vmatprep.subr.mxu0 0.0
        %449 = vmatpush1.msra.mxu0 0.0
        %450 = vmatprep.subr.mxu0 0.0
        %451 = vmatpush1.msra.mxu0 0.0
        %452 = vmatprep.subr.mxu0 0.0
        %453 = vmatpush1.msra.mxu0 0.0
        %454 = vmatprep.subr.mxu0 0.0
        %455 = vmatpush1.msra.mxu0 0.0
        %456 = vmatprep.subr.mxu0 0.0
        %457 = vmatpush1.msra.mxu0 0.0
        %458 = vmatprep.subr.mxu0 0.0
        %459 = vmatpush1.msra.mxu0 0.0
        %460 = vmatprep.subr.mxu0 0.0
        %461 = vmatpush1.msra.mxu0 0.0
        %462 = vmatprep.subr.mxu0 0.0
        %463 = vmatpush1.msra.mxu0 0.0
        %464 = vmatprep.subr.mxu0 0.0
        %465 = vmatpush1.msra.mxu0 0.0
        %466 = vmatprep.mubr.f32.mxu0 0.0
        %467 = vmatmul.mubr.f32.gmra.mrb[0].mxu0 %v379
        %v468 = vpop.f32.mrb[0].mxu0
        %v469 = vadd.f32 %v376, %v468
        %v470 = vpop.f32.mrb[0].mxu0
        %471 = vmatprep.mubr.f32.mxu0 0.0
        %472 = vmatmul.mubr.f32.gmra.mrb[0].mxu0 %v382
        %v473 = vpop.f32.mrb[0].mxu0
        %v474 = vadd.f32 %v376, %v473
        %v475 = vpop.f32.mrb[0].mxu0
        %476 = vmatprep.mubr.f32.mxu0 0.0
        %477 = vmatmul.mubr.f32.gmra.mrb[0].mxu0 %v385
        %v478 = vpop.f32.mrb[0].mxu0
        %v479 = vadd.f32 %v376, %v478
        %v480 = vpop.f32.mrb[0].mxu0
        %481 = vmatprep.mubr.f32.mxu0 0.0
        %482 = vmatmul.mubr.f32.gmra.mrb[0].mxu0 %v388
        %v483 = vpop.f32.mrb[0].mxu0
        %v484 = vadd.f32 %v376, %v483
        %v485 = vpop.f32.mrb[0].mxu0
        %486 = vmatprep.mubr.f32.mxu0 0.0
        %487 = vmatmul.mubr.f32.gmra.mrb[0].mxu0 %v391
        %v488 = vpop.f32.mrb[0].mxu0
        %v489 = vadd.f32 %v376, %v488
        %v490 = vpop.f32.mrb[0].mxu0
        %491 = vmatprep.mubr.f32.mxu0 0.0
        %492 = vmatmul.mubr.f32.gmra.mrb[0].mxu0 %v394
        %v493 = vpop.f32.mrb[0].mxu0
        %v494 = vadd.f32 %v376, %v493
        %v495 = vpop.f32.mrb[0].mxu0
        %496 = vmatprep.mubr.f32.mxu0 0.0
        %497 = vmatmul.mubr.f32.gmra.mrb[0].mxu0 %v397
        %v498 = vpop.f32.mrb[0].mxu0
        %v499 = vadd.f32 %v376, %v498
        %v500 = vpop.f32.mrb[0].mxu0
        %501 = vmatprep.mubr.f32.mxu0 0.0
        %502 = vmatmul.mubr.f32.gmra.mrb[0].mxu0 %v400
        %v503 = vpop.f32.mrb[0].mxu0
        %v504 = vadd.f32 %v376, %v503
        %v505 = vpop.f32.mrb[0].mxu0
        %506 = vdwg.mxu0
        %v507 = vld [vmem:[#allocation2] sm:$0xff]
        %vm508 = vcmask 261120
        %v510 = vsel %vm508, %v507, 0
        %512 = vmatprep.subr.mxu0 0.0
        %513 = vmatpush1.msra.mxu0 %v204
        %514 = vmatprep.subr.mxu0 0.0
        %515 = vmatpush1.msra.mxu0 %v205
        %516 = vmatprep.subr.mxu0 0.0
        %517 = vmatpush1.msra.mxu0 %v206
        %518 = vmatprep.subr.mxu0 0.0
        %519 = vmatpush1.msra.mxu0 %v207
        %520 = vmatprep.subr.mxu0 0.0
        %521 = vmatpush1.msra.mxu0 0.0
        %522 = vmatprep.subr.mxu0 0.0
        %523 = vmatpush1.msra.mxu0 0.0
        %524 = vmatprep.subr.mxu0 0.0
        %525 = vmatpush1.msra.mxu0 0.0
        %526 = vmatprep.subr.mxu0 0.0
        %527 = vmatpush1.msra.mxu0 0.0
        %528 = vmatprep.subr.mxu0 0.0
        %529 = vmatpush1.msra.mxu0 0.0
        %530 = vmatprep.subr.mxu0 0.0
        %531 = vmatpush1.msra.mxu0 0.0
        %532 = vmatprep.subr.mxu0 0.0
        %533 = vmatpush1.msra.mxu0 0.0
        %534 = vmatprep.subr.mxu0 0.0
        %535 = vmatpush1.msra.mxu0 0.0
        %536 = vmatprep.subr.mxu0 0.0
        %537 = vmatpush1.msra.mxu0 0.0
        %538 = vmatprep.subr.mxu0 0.0
        %539 = vmatpush1.msra.mxu0 0.0
        %540 = vmatprep.subr.mxu0 0.0
        %541 = vmatpush1.msra.mxu0 0.0
        %542 = vmatprep.subr.mxu0 0.0
        %543 = vmatpush1.msra.mxu0 0.0
        %544 = vmatprep.subr.mxu0 0.0
        %545 = vmatpush1.msra.mxu0 0.0
        %546 = vmatprep.subr.mxu0 0.0
        %547 = vmatpush1.msra.mxu0 0.0
        %548 = vmatprep.subr.mxu0 0.0
        %549 = vmatpush1.msra.mxu0 0.0
        %550 = vmatprep.subr.mxu0 0.0
        %551 = vmatpush1.msra.mxu0 0.0
        %552 = vmatprep.subr.mxu0 0.0
        %553 = vmatpush1.msra.mxu0 0.0
        %554 = vmatprep.subr.mxu0 0.0
        %555 = vmatpush1.msra.mxu0 0.0
        %556 = vmatprep.subr.mxu0 0.0
        %557 = vmatpush1.msra.mxu0 0.0
        %558 = vmatprep.subr.mxu0 0.0
        %559 = vmatpush1.msra.mxu0 0.0
        %560 = vmatprep.subr.mxu0 0.0
        %561 = vmatpush1.msra.mxu0 0.0
        %562 = vmatprep.subr.mxu0 0.0
        %563 = vmatpush1.msra.mxu0 0.0
        %564 = vmatprep.subr.mxu0 0.0
        %565 = vmatpush1.msra.mxu0 0.0
        %566 = vmatprep.subr.mxu0 0.0
        %567 = vmatpush1.msra.mxu0 0.0
        %568 = vmatprep.subr.mxu0 0.0
        %569 = vmatpush1.msra.mxu0 0.0
        %570 = vmatprep.subr.mxu0 0.0
        %571 = vmatpush1.msra.mxu0 0.0
        %572 = vmatprep.subr.mxu0 0.0
        %573 = vmatpush1.msra.mxu0 0.0
        %574 = vmatprep.subr.mxu0 0.0
        %575 = vmatpush1.msra.mxu0 0.0
        %576 = vmatprep.mubr.f32.mxu0 0.0
        %577 = vmatmul.mubr.f32.gmra.mrb[0].mxu0 %v510
        %v578 = vpop.f32.mrb[0].mxu0
        %v579 = vadd.f32 0.0, %v578
        %v580 = vpop.f32.mrb[0].mxu0
        %581 = vdwg.mxu0
        %v582 = vadd.f32 %v469, %v579
        %v583 = vxor.u32 %v582, 2147483648
        %v584 = vmul.f32 %v583, 1.442695
        %v585 = vpow.pop %v584
        %v586 = vadd.f32 %v585, 1.0
        %v587 = vrcp.pop %v586
        %v588 = vmul.f32 1.0, %v587
        %v589 = vlaneseq
        %v590 = vshrl.u32 %v589, 7
        %v591 = vsub.s32 0, %v590
        %v592 = vrot.slane %v225, %v591
        %594 = vrot.lane.b32.xlu0 %v592, 64
        %v595 = vpop.permute.xlu0 %594
        %v597 = vadd.f32 %v579, %v595
        %599 = vrot.lane.b32.xlu0 %v597, 64
        %v600 = vpop.permute.xlu0 %599
        %v602 = vmul.f32 %v588, %v600
        %604 = vrot.lane.b32.xlu0 %v602, 64
        %v605 = vpop.permute.xlu0 %604
        %v607 = vadd.f32 %v469, %v605
        %v608 = vtanh.pop %v607
        %v609 = vsub.f32 1.0, %v588
        %611 = vrot.lane.b32.xlu0 %v608, 96
        %v612 = vpop.permute.xlu0 %611
        %v614 = vmul.f32 %v609, %v612
        %615 = vrot.lane.b32.xlu0 %v507, 32
        %v616 = vpop.permute.xlu0 %615
        %v618 = vmul.f32 %v588, %v616
        %v619 = vadd.f32 %v614, %v618
        %621 = vrot.lane.b32.xlu0 %v619, 96
        %v622 = vpop.permute.xlu0 %621
        %v623 = vsel %vm508, %v622, 0
        %625 = vmatprep.subr.mxu0 0.0
        %626 = vmatpush1.msra.mxu0 %v204
        %627 = vmatprep.subr.mxu0 0.0
        %628 = vmatpush1.msra.mxu0 %v205
        %629 = vmatprep.subr.mxu0 0.0
        %630 = vmatpush1.msra.mxu0 %v206
        %631 = vmatprep.subr.mxu0 0.0
        %632 = vmatpush1.msra.mxu0 %v207
        %633 = vmatprep.subr.mxu0 0.0
        %634 = vmatpush1.msra.mxu0 0.0
        %635 = vmatprep.subr.mxu0 0.0
        %636 = vmatpush1.msra.mxu0 0.0
        %637 = vmatprep.subr.mxu0 0.0
        %638 = vmatpush1.msra.mxu0 0.0
        %639 = vmatprep.subr.mxu0 0.0
        %640 = vmatpush1.msra.mxu0 0.0
        %641 = vmatprep.subr.mxu0 0.0
        %642 = vmatpush1.msra.mxu0 0.0
        %643 = vmatprep.subr.mxu0 0.0
        %644 = vmatpush1.msra.mxu0 0.0
        %645 = vmatprep.subr.mxu0 0.0
        %646 = vmatpush1.msra.mxu0 0.0
        %647 = vmatprep.subr.mxu0 0.0
        %648 = vmatpush1.msra.mxu0 0.0
        %649 = vmatprep.subr.mxu0 0.0
        %650 = vmatpush1.msra.mxu0 0.0
        %651 = vmatprep.subr.mxu0 0.0
        %652 = vmatpush1.msra.mxu0 0.0
        %653 = vmatprep.subr.mxu0 0.0
        %654 = vmatpush1.msra.mxu0 0.0
        %655 = vmatprep.subr.mxu0 0.0
        %656 = vmatpush1.msra.mxu0 0.0
        %657 = vmatprep.subr.mxu0 0.0
        %658 = vmatpush1.msra.mxu0 0.0
        %659 = vmatprep.subr.mxu0 0.0
        %660 = vmatpush1.msra.mxu0 0.0
        %661 = vmatprep.subr.mxu0 0.0
        %662 = vmatpush1.msra.mxu0 0.0
        %663 = vmatprep.subr.mxu0 0.0
        %664 = vmatpush1.msra.mxu0 0.0
        %665 = vmatprep.subr.mxu0 0.0
        %666 = vmatpush1.msra.mxu0 0.0
        %667 = vmatprep.subr.mxu0 0.0
        %668 = vmatpush1.msra.mxu0 0.0
        %669 = vmatprep.subr.mxu0 0.0
        %670 = vmatpush1.msra.mxu0 0.0
        %671 = vmatprep.subr.mxu0 0.0
        %672 = vmatpush1.msra.mxu0 0.0
        %673 = vmatprep.subr.mxu0 0.0
        %674 = vmatpush1.msra.mxu0 0.0
        %675 = vmatprep.subr.mxu0 0.0
        %676 = vmatpush1.msra.mxu0 0.0
        %677 = vmatprep.subr.mxu0 0.0
        %678 = vmatpush1.msra.mxu0 0.0
        %679 = vmatprep.subr.mxu0 0.0
        %680 = vmatpush1.msra.mxu0 0.0
        %681 = vmatprep.subr.mxu0 0.0
        %682 = vmatpush1.msra.mxu0 0.0
        %683 = vmatprep.subr.mxu0 0.0
        %684 = vmatpush1.msra.mxu0 0.0
        %685 = vmatprep.subr.mxu0 0.0
        %686 = vmatpush1.msra.mxu0 0.0
        %687 = vmatprep.subr.mxu0 0.0
        %688 = vmatpush1.msra.mxu0 0.0
        %689 = vmatprep.mubr.f32.mxu0 0.0
        %690 = vmatmul.mubr.f32.gmra.mrb[0].mxu0 %v623
        %v691 = vpop.f32.mrb[0].mxu0
        %v692 = vadd.f32 0.0, %v691
        %v693 = vpop.f32.mrb[0].mxu0
        %694 = vdwg.mxu0
        %v695 = vadd.f32 %v474, %v692
        %v696 = vxor.u32 %v695, 2147483648
        %v697 = vmul.f32 %v696, 1.442695
        %v698 = vpow.pop %v697
        %v699 = vadd.f32 %v698, 1.0
        %v700 = vrcp.pop %v699
        %v701 = vmul.f32 1.0, %v700
        %v702 = vadd.f32 %v692, %v595
        %704 = vrot.lane.b32.xlu0 %v702, 64
        %v705 = vpop.permute.xlu0 %704
        %v707 = vmul.f32 %v701, %v705
        %709 = vrot.lane.b32.xlu0 %v707, 64
        %v710 = vpop.permute.xlu0 %709
        %v712 = vadd.f32 %v474, %v710
        %v713 = vtanh.pop %v712
        %v714 = vsub.f32 1.0, %v701
        %716 = vrot.lane.b32.xlu0 %v713, 96
        %v717 = vpop.permute.xlu0 %716
        %v719 = vmul.f32 %v714, %v717
        %v720 = vmul.f32 %v701, %v619
        %v721 = vadd.f32 %v719, %v720
        %723 = vrot.lane.b32.xlu0 %v721, 96
        %v724 = vpop.permute.xlu0 %723
        %v725 = vsel %vm508, %v724, 0
        %727 = vmatprep.subr.mxu0 0.0
        %728 = vmatpush1.msra.mxu0 %v204
        %729 = vmatprep.subr.mxu0 0.0
        %730 = vmatpush1.msra.mxu0 %v205
        %731 = vmatprep.subr.mxu0 0.0
        %732 = vmatpush1.msra.mxu0 %v206
        %733 = vmatprep.subr.mxu0 0.0
        %734 = vmatpush1.msra.mxu0 %v207
        %735 = vmatprep.subr.mxu0 0.0
        %736 = vmatpush1.msra.mxu0 0.0
        %737 = vmatprep.subr.mxu0 0.0
        %738 = vmatpush1.msra.mxu0 0.0
        %739 = vmatprep.subr.mxu0 0.0
        %740 = vmatpush1.msra.mxu0 0.0
        %741 = vmatprep.subr.mxu0 0.0
        %742 = vmatpush1.msra.mxu0 0.0
        %743 = vmatprep.subr.mxu0 0.0
        %744 = vmatpush1.msra.mxu0 0.0
        %745 = vmatprep.subr.mxu0 0.0
        %746 = vmatpush1.msra.mxu0 0.0
        %747 = vmatprep.subr.mxu0 0.0
        %748 = vmatpush1.msra.mxu0 0.0
        %749 = vmatprep.subr.mxu0 0.0
        %750 = vmatpush1.msra.mxu0 0.0
        %751 = vmatprep.subr.mxu0 0.0
        %752 = vmatpush1.msra.mxu0 0.0
        %753 = vmatprep.subr.mxu0 0.0
        %754 = vmatpush1.msra.mxu0 0.0
        %755 = vmatprep.subr.mxu0 0.0
        %756 = vmatpush1.msra.mxu0 0.0
        %757 = vmatprep.subr.mxu0 0.0
        %758 = vmatpush1.msra.mxu0 0.0
        %759 = vmatprep.subr.mxu0 0.0
        %760 = vmatpush1.msra.mxu0 0.0
        %761 = vmatprep.subr.mxu0 0.0
        %762 = vmatpush1.msra.mxu0 0.0
        %763 = vmatprep.subr.mxu0 0.0
        %764 = vmatpush1.msra.mxu0 0.0
        %765 = vmatprep.subr.mxu0 0.0
        %766 = vmatpush1.msra.mxu0 0.0
        %767 = vmatprep.subr.mxu0 0.0
        %768 = vmatpush1.msra.mxu0 0.0
        %769 = vmatprep.subr.mxu0 0.0
        %770 = vmatpush1.msra.mxu0 0.0
        %771 = vmatprep.subr.mxu0 0.0
        %772 = vmatpush1.msra.mxu0 0.0
        %773 = vmatprep.subr.mxu0 0.0
        %774 = vmatpush1.msra.mxu0 0.0
        %775 = vmatprep.subr.mxu0 0.0
        %776 = vmatpush1.msra.mxu0 0.0
        %777 = vmatprep.subr.mxu0 0.0
        %778 = vmatpush1.msra.mxu0 0.0
        %779 = vmatprep.subr.mxu0 0.0
        %780 = vmatpush1.msra.mxu0 0.0
        %781 = vmatprep.subr.mxu0 0.0
        %782 = vmatpush1.msra.mxu0 0.0
        %783 = vmatprep.subr.mxu0 0.0
        %784 = vmatpush1.msra.mxu0 0.0
        %785 = vmatprep.subr.mxu0 0.0
        %786 = vmatpush1.msra.mxu0 0.0
        %787 = vmatprep.subr.mxu0 0.0
        %788 = vmatpush1.msra.mxu0 0.0
        %789 = vmatprep.subr.mxu0 0.0
        %790 = vmatpush1.msra.mxu0 0.0
        %791 = vmatprep.mubr.f32.mxu0 0.0
        %792 = vmatmul.mubr.f32.gmra.mrb[0].mxu0 %v725
        %v793 = vpop.f32.mrb[0].mxu0
        %v794 = vadd.f32 0.0, %v793
        %v795 = vpop.f32.mrb[0].mxu0
        %796 = vdwg.mxu0
        %v797 = vadd.f32 %v479, %v794
        %v798 = vxor.u32 %v797, 2147483648
        %v799 = vmul.f32 %v798, 1.442695
        %v800 = vpow.pop %v799
        %v801 = vadd.f32 %v800, 1.0
        %v802 = vrcp.pop %v801
        %v803 = vmul.f32 1.0, %v802
        %v804 = vadd.f32 %v794, %v595
        %806 = vrot.lane.b32.xlu0 %v804, 64
        %v807 = vpop.permute.xlu0 %806
        %v809 = vmul.f32 %v803, %v807
        %811 = vrot.lane.b32.xlu0 %v809, 64
        %v812 = vpop.permute.xlu0 %811
        %v814 = vadd.f32 %v479, %v812
        %v815 = vtanh.pop %v814
        %v816 = vsub.f32 1.0, %v803
        %818 = vrot.lane.b32.xlu0 %v815, 96
        %v819 = vpop.permute.xlu0 %818
        %v821 = vmul.f32 %v816, %v819
        %v822 = vmul.f32 %v803, %v721
        %v823 = vadd.f32 %v821, %v822
        %825 = vrot.lane.b32.xlu0 %v823, 96
        %v826 = vpop.permute.xlu0 %825
        %v827 = vsel %vm508, %v826, 0
        %829 = vmatprep.subr.mxu0 0.0
        %830 = vmatpush1.msra.mxu0 %v204
        %831 = vmatprep.subr.mxu0 0.0
        %832 = vmatpush1.msra.mxu0 %v205
        %833 = vmatprep.subr.mxu0 0.0
        %834 = vmatpush1.msra.mxu0 %v206
        %835 = vmatprep.subr.mxu0 0.0
        %836 = vmatpush1.msra.mxu0 %v207
        %837 = vmatprep.subr.mxu0 0.0
        %838 = vmatpush1.msra.mxu0 0.0
        %839 = vmatprep.subr.mxu0 0.0
        %840 = vmatpush1.msra.mxu0 0.0
        %841 = vmatprep.subr.mxu0 0.0
        %842 = vmatpush1.msra.mxu0 0.0
        %843 = vmatprep.subr.mxu0 0.0
        %844 = vmatpush1.msra.mxu0 0.0
        %845 = vmatprep.subr.mxu0 0.0
        %846 = vmatpush1.msra.mxu0 0.0
        %847 = vmatprep.subr.mxu0 0.0
        %848 = vmatpush1.msra.mxu0 0.0
        %849 = vmatprep.subr.mxu0 0.0
        %850 = vmatpush1.msra.mxu0 0.0
        %851 = vmatprep.subr.mxu0 0.0
        %852 = vmatpush1.msra.mxu0 0.0
        %853 = vmatprep.subr.mxu0 0.0
        %854 = vmatpush1.msra.mxu0 0.0
        %855 = vmatprep.subr.mxu0 0.0
        %856 = vmatpush1.msra.mxu0 0.0
        %857 = vmatprep.subr.mxu0 0.0
        %858 = vmatpush1.msra.mxu0 0.0
        %859 = vmatprep.subr.mxu0 0.0
        %860 = vmatpush1.msra.mxu0 0.0
        %861 = vmatprep.subr.mxu0 0.0
        %862 = vmatpush1.msra.mxu0 0.0
        %863 = vmatprep.subr.mxu0 0.0
        %864 = vmatpush1.msra.mxu0 0.0
        %865 = vmatprep.subr.mxu0 0.0
        %866 = vmatpush1.msra.mxu0 0.0
        %867 = vmatprep.subr.mxu0 0.0
        %868 = vmatpush1.msra.mxu0 0.0
        %869 = vmatprep.subr.mxu0 0.0
        %870 = vmatpush1.msra.mxu0 0.0
        %871 = vmatprep.subr.mxu0 0.0
        %872 = vmatpush1.msra.mxu0 0.0
        %873 = vmatprep.subr.mxu0 0.0
        %874 = vmatpush1.msra.mxu0 0.0
        %875 = vmatprep.subr.mxu0 0.0
        %876 = vmatpush1.msra.mxu0 0.0
        %877 = vmatprep.subr.mxu0 0.0
        %878 = vmatpush1.msra.mxu0 0.0
        %879 = vmatprep.subr.mxu0 0.0
        %880 = vmatpush1.msra.mxu0 0.0
        %881 = vmatprep.subr.mxu0 0.0
        %882 = vmatpush1.msra.mxu0 0.0
        %883 = vmatprep.subr.mxu0 0.0
        %884 = vmatpush1.msra.mxu0 0.0
        %885 = vmatprep.subr.mxu0 0.0
        %886 = vmatpush1.msra.mxu0 0.0
        %887 = vmatprep.subr.mxu0 0.0
        %888 = vmatpush1.msra.mxu0 0.0
        %889 = vmatprep.subr.mxu0 0.0
        %890 = vmatpush1.msra.mxu0 0.0
        %891 = vmatprep.subr.mxu0 0.0
        %892 = vmatpush1.msra.mxu0 0.0
        %893 = vmatprep.mubr.f32.mxu0 0.0
        %894 = vmatmul.mubr.f32.gmra.mrb[0].mxu0 %v827
        %v895 = vpop.f32.mrb[0].mxu0
        %v896 = vadd.f32 0.0, %v895
        %v897 = vpop.f32.mrb[0].mxu0
        %898 = vdwg.mxu0
        %v899 = vadd.f32 %v484, %v896
        %v900 = vxor.u32 %v899, 2147483648
        %v901 = vmul.f32 %v900, 1.442695
        %v902 = vpow.pop %v901
        %v903 = vadd.f32 %v902, 1.0
        %v904 = vrcp.pop %v903
        %v905 = vmul.f32 1.0, %v904
        %v906 = vadd.f32 %v896, %v595
        %908 = vrot.lane.b32.xlu0 %v906, 64
        %v909 = vpop.permute.xlu0 %908
        %v911 = vmul.f32 %v905, %v909
        %913 = vrot.lane.b32.xlu0 %v911, 64
        %v914 = vpop.permute.xlu0 %913
        %v916 = vadd.f32 %v484, %v914
        %v917 = vtanh.pop %v916
        %v918 = vsub.f32 1.0, %v905
        %920 = vrot.lane.b32.xlu0 %v917, 96
        %v921 = vpop.permute.xlu0 %920
        %v923 = vmul.f32 %v918, %v921
        %v924 = vmul.f32 %v905, %v823
        %v925 = vadd.f32 %v923, %v924
        %927 = vrot.lane.b32.xlu0 %v925, 96
        %v928 = vpop.permute.xlu0 %927
        %v929 = vsel %vm508, %v928, 0
        %931 = vmatprep.subr.mxu0 0.0
        %932 = vmatpush1.msra.mxu0 %v204
        %933 = vmatprep.subr.mxu0 0.0
        %934 = vmatpush1.msra.mxu0 %v205
        %935 = vmatprep.subr.mxu0 0.0
        %936 = vmatpush1.msra.mxu0 %v206
        %937 = vmatprep.subr.mxu0 0.0
        %938 = vmatpush1.msra.mxu0 %v207
        %939 = vmatprep.subr.mxu0 0.0
        %940 = vmatpush1.msra.mxu0 0.0
        %941 = vmatprep.subr.mxu0 0.0
        %942 = vmatpush1.msra.mxu0 0.0
        %943 = vmatprep.subr.mxu0 0.0
        %944 = vmatpush1.msra.mxu0 0.0
        %945 = vmatprep.subr.mxu0 0.0
        %946 = vmatpush1.msra.mxu0 0.0
        %947 = vmatprep.subr.mxu0 0.0
        %948 = vmatpush1.msra.mxu0 0.0
        %949 = vmatprep.subr.mxu0 0.0
        %950 = vmatpush1.msra.mxu0 0.0
        %951 = vmatprep.subr.mxu0 0.0
        %952 = vmatpush1.msra.mxu0 0.0
        %953 = vmatprep.subr.mxu0 0.0
        %954 = vmatpush1.msra.mxu0 0.0
        %955 = vmatprep.subr.mxu0 0.0
        %956 = vmatpush1.msra.mxu0 0.0
        %957 = vmatprep.subr.mxu0 0.0
        %958 = vmatpush1.msra.mxu0 0.0
        %959 = vmatprep.subr.mxu0 0.0
        %960 = vmatpush1.msra.mxu0 0.0
        %961 = vmatprep.subr.mxu0 0.0
        %962 = vmatpush1.msra.mxu0 0.0
        %963 = vmatprep.subr.mxu0 0.0
        %964 = vmatpush1.msra.mxu0 0.0
        %965 = vmatprep.subr.mxu0 0.0
        %966 = vmatpush1.msra.mxu0 0.0
        %967 = vmatprep.subr.mxu0 0.0
        %968 = vmatpush1.msra.mxu0 0.0
        %969 = vmatprep.subr.mxu0 0.0
        %970 = vmatpush1.msra.mxu0 0.0
        %971 = vmatprep.subr.mxu0 0.0
        %972 = vmatpush1.msra.mxu0 0.0
        %973 = vmatprep.subr.mxu0 0.0
        %974 = vmatpush1.msra.mxu0 0.0
        %975 = vmatprep.subr.mxu0 0.0
        %976 = vmatpush1.msra.mxu0 0.0
        %977 = vmatprep.subr.mxu0 0.0
        %978 = vmatpush1.msra.mxu0 0.0
        %979 = vmatprep.subr.mxu0 0.0
        %980 = vmatpush1.msra.mxu0 0.0
        %981 = vmatprep.subr.mxu0 0.0
        %982 = vmatpush1.msra.mxu0 0.0
        %983 = vmatprep.subr.mxu0 0.0
        %984 = vmatpush1.msra.mxu0 0.0
        %985 = vmatprep.subr.mxu0 0.0
        %986 = vmatpush1.msra.mxu0 0.0
        %987 = vmatprep.subr.mxu0 0.0
        %988 = vmatpush1.msra.mxu0 0.0
        %989 = vmatprep.subr.mxu0 0.0
        %990 = vmatpush1.msra.mxu0 0.0
        %991 = vmatprep.subr.mxu0 0.0
        %992 = vmatpush1.msra.mxu0 0.0
        %993 = vmatprep.subr.mxu0 0.0
        %994 = vmatpush1.msra.mxu0 0.0
        %995 = vmatprep.mubr.f32.mxu0 0.0
        %996 = vmatmul.mubr.f32.gmra.mrb[0].mxu0 %v929
        %v997 = vpop.f32.mrb[0].mxu0
        %v998 = vadd.f32 0.0, %v997
        %v999 = vpop.f32.mrb[0].mxu0
        %1000 = vdwg.mxu0
        %v1001 = vadd.f32 %v489, %v998
        %v1002 = vxor.u32 %v1001, 2147483648
        %v1003 = vmul.f32 %v1002, 1.442695
        %v1004 = vpow.pop %v1003
        %v1005 = vadd.f32 %v1004, 1.0
        %v1006 = vrcp.pop %v1005
        %v1007 = vmul.f32 1.0, %v1006
        %v1008 = vadd.f32 %v998, %v595
        %1010 = vrot.lane.b32.xlu0 %v1008, 64
        %v1011 = vpop.permute.xlu0 %1010
        %v1013 = vmul.f32 %v1007, %v1011
        %1015 = vrot.lane.b32.xlu0 %v1013, 64
        %v1016 = vpop.permute.xlu0 %1015
        %v1018 = vadd.f32 %v489, %v1016
        %v1019 = vtanh.pop %v1018
        %v1020 = vsub.f32 1.0, %v1007
        %1022 = vrot.lane.b32.xlu0 %v1019, 96
        %v1023 = vpop.permute.xlu0 %1022
        %v1025 = vmul.f32 %v1020, %v1023
        %v1026 = vmul.f32 %v1007, %v925
        %v1027 = vadd.f32 %v1025, %v1026
        %1029 = vrot.lane.b32.xlu0 %v1027, 96
        %v1030 = vpop.permute.xlu0 %1029
        %v1031 = vsel %vm508, %v1030, 0
        %1033 = vmatprep.subr.mxu0 0.0
        %1034 = vmatpush1.msra.mxu0 %v204
        %1035 = vmatprep.subr.mxu0 0.0
        %1036 = vmatpush1.msra.mxu0 %v205
        %1037 = vmatprep.subr.mxu0 0.0
        %1038 = vmatpush1.msra.mxu0 %v206
        %1039 = vmatprep.subr.mxu0 0.0
        %1040 = vmatpush1.msra.mxu0 %v207
        %1041 = vmatprep.subr.mxu0 0.0
        %1042 = vmatpush1.msra.mxu0 0.0
        %1043 = vmatprep.subr.mxu0 0.0
        %1044 = vmatpush1.msra.mxu0 0.0
        %1045 = vmatprep.subr.mxu0 0.0
        %1046 = vmatpush1.msra.mxu0 0.0
        %1047 = vmatprep.subr.mxu0 0.0
        %1048 = vmatpush1.msra.mxu0 0.0
        %1049 = vmatprep.subr.mxu0 0.0
        %1050 = vmatpush1.msra.mxu0 0.0
        %1051 = vmatprep.subr.mxu0 0.0
        %1052 = vmatpush1.msra.mxu0 0.0
        %1053 = vmatprep.subr.mxu0 0.0
        %1054 = vmatpush1.msra.mxu0 0.0
        %1055 = vmatprep.subr.mxu0 0.0
        %1056 = vmatpush1.msra.mxu0 0.0
        %1057 = vmatprep.subr.mxu0 0.0
        %1058 = vmatpush1.msra.mxu0 0.0
        %1059 = vmatprep.subr.mxu0 0.0
        %1060 = vmatpush1.msra.mxu0 0.0
        %1061 = vmatprep.subr.mxu0 0.0
        %1062 = vmatpush1.msra.mxu0 0.0
        %1063 = vmatprep.subr.mxu0 0.0
        %1064 = vmatpush1.msra.mxu0 0.0
        %1065 = vmatprep.subr.mxu0 0.0
        %1066 = vmatpush1.msra.mxu0 0.0
        %1067 = vmatprep.subr.mxu0 0.0
        %1068 = vmatpush1.msra.mxu0 0.0
        %1069 = vmatprep.subr.mxu0 0.0
        %1070 = vmatpush1.msra.mxu0 0.0
        %1071 = vmatprep.subr.mxu0 0.0
        %1072 = vmatpush1.msra.mxu0 0.0
        %1073 = vmatprep.subr.mxu0 0.0
        %1074 = vmatpush1.msra.mxu0 0.0
        %1075 = vmatprep.subr.mxu0 0.0
        %1076 = vmatpush1.msra.mxu0 0.0
        %1077 = vmatprep.subr.mxu0 0.0
        %1078 = vmatpush1.msra.mxu0 0.0
        %1079 = vmatprep.subr.mxu0 0.0
        %1080 = vmatpush1.msra.mxu0 0.0
        %1081 = vmatprep.subr.mxu0 0.0
        %1082 = vmatpush1.msra.mxu0 0.0
        %1083 = vmatprep.subr.mxu0 0.0
        %1084 = vmatpush1.msra.mxu0 0.0
        %1085 = vmatprep.subr.mxu0 0.0
        %1086 = vmatpush1.msra.mxu0 0.0
        %1087 = vmatprep.subr.mxu0 0.0
        %1088 = vmatpush1.msra.mxu0 0.0
        %1089 = vmatprep.subr.mxu0 0.0
        %1090 = vmatpush1.msra.mxu0 0.0
        %1091 = vmatprep.subr.mxu0 0.0
        %1092 = vmatpush1.msra.mxu0 0.0
        %1093 = vmatprep.subr.mxu0 0.0
        %1094 = vmatpush1.msra.mxu0 0.0
        %1095 = vmatprep.subr.mxu0 0.0
        %1096 = vmatpush1.msra.mxu0 0.0
        %1097 = vmatprep.mubr.f32.mxu0 0.0
        %1098 = vmatmul.mubr.f32.gmra.mrb[0].mxu0 %v1031
        %v1099 = vpop.f32.mrb[0].mxu0
        %v1100 = vadd.f32 0.0, %v1099
        %v1101 = vpop.f32.mrb[0].mxu0
        %1102 = vdwg.mxu0
        %v1103 = vadd.f32 %v494, %v1100
        %v1104 = vxor.u32 %v1103, 2147483648
        %v1105 = vmul.f32 %v1104, 1.442695
        %v1106 = vpow.pop %v1105
        %v1107 = vadd.f32 %v1106, 1.0
        %v1108 = vrcp.pop %v1107
        %v1109 = vmul.f32 1.0, %v1108
        %v1110 = vadd.f32 %v1100, %v595
        %1112 = vrot.lane.b32.xlu0 %v1110, 64
        %v1113 = vpop.permute.xlu0 %1112
        %v1115 = vmul.f32 %v1109, %v1113
        %1117 = vrot.lane.b32.xlu0 %v1115, 64
        %v1118 = vpop.permute.xlu0 %1117
        %v1120 = vadd.f32 %v494, %v1118
        %v1121 = vtanh.pop %v1120
        %v1122 = vsub.f32 1.0, %v1109
        %1124 = vrot.lane.b32.xlu0 %v1121, 96
        %v1125 = vpop.permute.xlu0 %1124
        %v1127 = vmul.f32 %v1122, %v1125
        %v1128 = vmul.f32 %v1109, %v1027
        %v1129 = vadd.f32 %v1127, %v1128
        %1131 = vrot.lane.b32.xlu0 %v1129, 96
        %v1132 = vpop.permute.xlu0 %1131
        %v1133 = vsel %vm508, %v1132, 0
        %1135 = vmatprep.subr.mxu0 0.0
        %1136 = vmatpush1.msra.mxu0 %v204
        %1137 = vmatprep.subr.mxu0 0.0
        %1138 = vmatpush1.msra.mxu0 %v205
        %1139 = vmatprep.subr.mxu0 0.0
        %1140 = vmatpush1.msra.mxu0 %v206
        %1141 = vmatprep.subr.mxu0 0.0
        %1142 = vmatpush1.msra.mxu0 %v207
        %1143 = vmatprep.subr.mxu0 0.0
        %1144 = vmatpush1.msra.mxu0 0.0
        %1145 = vmatprep.subr.mxu0 0.0
        %1146 = vmatpush1.msra.mxu0 0.0
        %1147 = vmatprep.subr.mxu0 0.0
        %1148 = vmatpush1.msra.mxu0 0.0
        %1149 = vmatprep.subr.mxu0 0.0
        %1150 = vmatpush1.msra.mxu0 0.0
        %1151 = vmatprep.subr.mxu0 0.0
        %1152 = vmatpush1.msra.mxu0 0.0
        %1153 = vmatprep.subr.mxu0 0.0
        %1154 = vmatpush1.msra.mxu0 0.0
        %1155 = vmatprep.subr.mxu0 0.0
        %1156 = vmatpush1.msra.mxu0 0.0
        %1157 = vmatprep.subr.mxu0 0.0
        %1158 = vmatpush1.msra.mxu0 0.0
        %1159 = vmatprep.subr.mxu0 0.0
        %1160 = vmatpush1.msra.mxu0 0.0
        %1161 = vmatprep.subr.mxu0 0.0
        %1162 = vmatpush1.msra.mxu0 0.0
        %1163 = vmatprep.subr.mxu0 0.0
        %1164 = vmatpush1.msra.mxu0 0.0
        %1165 = vmatprep.subr.mxu0 0.0
        %1166 = vmatpush1.msra.mxu0 0.0
        %1167 = vmatprep.subr.mxu0 0.0
        %1168 = vmatpush1.msra.mxu0 0.0
        %1169 = vmatprep.subr.mxu0 0.0
        %1170 = vmatpush1.msra.mxu0 0.0
        %1171 = vmatprep.subr.mxu0 0.0
        %1172 = vmatpush1.msra.mxu0 0.0
        %1173 = vmatprep.subr.mxu0 0.0
        %1174 = vmatpush1.msra.mxu0 0.0
        %1175 = vmatprep.subr.mxu0 0.0
        %1176 = vmatpush1.msra.mxu0 0.0
        %1177 = vmatprep.subr.mxu0 0.0
        %1178 = vmatpush1.msra.mxu0 0.0
        %1179 = vmatprep.subr.mxu0 0.0
        %1180 = vmatpush1.msra.mxu0 0.0
        %1181 = vmatprep.subr.mxu0 0.0
        %1182 = vmatpush1.msra.mxu0 0.0
        %1183 = vmatprep.subr.mxu0 0.0
        %1184 = vmatpush1.msra.mxu0 0.0
        %1185 = vmatprep.subr.mxu0 0.0
        %1186 = vmatpush1.msra.mxu0 0.0
        %1187 = vmatprep.subr.mxu0 0.0
        %1188 = vmatpush1.msra.mxu0 0.0
        %1189 = vmatprep.subr.mxu0 0.0
        %1190 = vmatpush1.msra.mxu0 0.0
        %1191 = vmatprep.subr.mxu0 0.0
        %1192 = vmatpush1.msra.mxu0 0.0
        %1193 = vmatprep.subr.mxu0 0.0
        %1194 = vmatpush1.msra.mxu0 0.0
        %1195 = vmatprep.subr.mxu0 0.0
        %1196 = vmatpush1.msra.mxu0 0.0
        %1197 = vmatprep.subr.mxu0 0.0
        %1198 = vmatpush1.msra.mxu0 0.0
        %1199 = vmatprep.mubr.f32.mxu0 0.0
        %1200 = vmatmul.mubr.f32.gmra.mrb[0].mxu0 %v1133
        %v1201 = vpop.f32.mrb[0].mxu0
        %v1202 = vadd.f32 0.0, %v1201
        %v1203 = vpop.f32.mrb[0].mxu0
        %1204 = vdwg.mxu0
        %v1205 = vadd.f32 %v499, %v1202
        %v1206 = vxor.u32 %v1205, 2147483648
        %v1207 = vmul.f32 %v1206, 1.442695
        %v1208 = vpow.pop %v1207
        %v1209 = vadd.f32 %v1208, 1.0
        %v1210 = vrcp.pop %v1209
        %v1211 = vmul.f32 1.0, %v1210
        %v1212 = vadd.f32 %v1202, %v595
        %1214 = vrot.lane.b32.xlu0 %v1212, 64
        %v1215 = vpop.permute.xlu0 %1214
        %v1217 = vmul.f32 %v1211, %v1215
        %1219 = vrot.lane.b32.xlu0 %v1217, 64
        %v1220 = vpop.permute.xlu0 %1219
        %v1222 = vadd.f32 %v499, %v1220
        %v1223 = vtanh.pop %v1222
        %v1224 = vsub.f32 1.0, %v1211
        %1226 = vrot.lane.b32.xlu0 %v1223, 96
        %v1227 = vpop.permute.xlu0 %1226
        %v1229 = vmul.f32 %v1224, %v1227
        %v1230 = vmul.f32 %v1211, %v1129
        %v1231 = vadd.f32 %v1229, %v1230
        %1233 = vrot.lane.b32.xlu0 %v1231, 96
        %v1234 = vpop.permute.xlu0 %1233
        %v1235 = vsel %vm508, %v1234, 0
        %1237 = vmatprep.subr.mxu0 0.0
        %1238 = vmatpush1.msra.mxu0 %v204
        %1239 = vmatprep.subr.mxu0 0.0
        %1240 = vmatpush1.msra.mxu0 %v205
        %1241 = vmatprep.subr.mxu0 0.0
        %1242 = vmatpush1.msra.mxu0 %v206
        %1243 = vmatprep.subr.mxu0 0.0
        %1244 = vmatpush1.msra.mxu0 %v207
        %1245 = vmatprep.subr.mxu0 0.0
        %1246 = vmatpush1.msra.mxu0 0.0
        %1247 = vmatprep.subr.mxu0 0.0
        %1248 = vmatpush1.msra.mxu0 0.0
        %1249 = vmatprep.subr.mxu0 0.0
        %1250 = vmatpush1.msra.mxu0 0.0
        %1251 = vmatprep.subr.mxu0 0.0
        %1252 = vmatpush1.msra.mxu0 0.0
        %1253 = vmatprep.subr.mxu0 0.0
        %1254 = vmatpush1.msra.mxu0 0.0
        %1255 = vmatprep.subr.mxu0 0.0
        %1256 = vmatpush1.msra.mxu0 0.0
        %1257 = vmatprep.subr.mxu0 0.0
        %1258 = vmatpush1.msra.mxu0 0.0
        %1259 = vmatprep.subr.mxu0 0.0
        %1260 = vmatpush1.msra.mxu0 0.0
        %1261 = vmatprep.subr.mxu0 0.0
        %1262 = vmatpush1.msra.mxu0 0.0
        %1263 = vmatprep.subr.mxu0 0.0
        %1264 = vmatpush1.msra.mxu0 0.0
        %1265 = vmatprep.subr.mxu0 0.0
        %1266 = vmatpush1.msra.mxu0 0.0
        %1267 = vmatprep.subr.mxu0 0.0
        %1268 = vmatpush1.msra.mxu0 0.0
        %1269 = vmatprep.subr.mxu0 0.0
        %1270 = vmatpush1.msra.mxu0 0.0
        %1271 = vmatprep.subr.mxu0 0.0
        %1272 = vmatpush1.msra.mxu0 0.0
        %1273 = vmatprep.subr.mxu0 0.0
        %1274 = vmatpush1.msra.mxu0 0.0
        %1275 = vmatprep.subr.mxu0 0.0
        %1276 = vmatpush1.msra.mxu0 0.0
        %1277 = vmatprep.subr.mxu0 0.0
        %1278 = vmatpush1.msra.mxu0 0.0
        %1279 = vmatprep.subr.mxu0 0.0
        %1280 = vmatpush1.msra.mxu0 0.0
        %1281 = vmatprep.subr.mxu0 0.0
        %1282 = vmatpush1.msra.mxu0 0.0
        %1283 = vmatprep.subr.mxu0 0.0
        %1284 = vmatpush1.msra.mxu0 0.0
        %1285 = vmatprep.subr.mxu0 0.0
        %1286 = vmatpush1.msra.mxu0 0.0
        %1287 = vmatprep.subr.mxu0 0.0
        %1288 = vmatpush1.msra.mxu0 0.0
        %1289 = vmatprep.subr.mxu0 0.0
        %1290 = vmatpush1.msra.mxu0 0.0
        %1291 = vmatprep.subr.mxu0 0.0
        %1292 = vmatpush1.msra.mxu0 0.0
        %1293 = vmatprep.subr.mxu0 0.0
        %1294 = vmatpush1.msra.mxu0 0.0
        %1295 = vmatprep.subr.mxu0 0.0
        %1296 = vmatpush1.msra.mxu0 0.0
        %1297 = vmatprep.subr.mxu0 0.0
        %1298 = vmatpush1.msra.mxu0 0.0
        %1299 = vmatprep.subr.mxu0 0.0
        %1300 = vmatpush1.msra.mxu0 0.0
        %1301 = vmatprep.mubr.f32.mxu0 0.0
        %1302 = vmatmul.mubr.f32.gmra.mrb[0].mxu0 %v1235
        %v1303 = vpop.f32.mrb[0].mxu0
        %v1304 = vadd.f32 0.0, %v1303
        %v1305 = vpop.f32.mrb[0].mxu0
        %1306 = vdwg.mxu0
        %v1307 = vadd.f32 %v504, %v1304
        %v1308 = vxor.u32 %v1307, 2147483648
        %v1309 = vmul.f32 %v1308, 1.442695
        %v1310 = vpow.pop %v1309
        %v1311 = vadd.f32 %v1310, 1.0
        %v1312 = vrcp.pop %v1311
        %v1313 = vmul.f32 1.0, %v1312
        %v1314 = vadd.f32 %v1304, %v595
        %1316 = vrot.lane.b32.xlu0 %v1314, 64
        %v1317 = vpop.permute.xlu0 %1316
        %v1319 = vmul.f32 %v1313, %v1317
        %1321 = vrot.lane.b32.xlu0 %v1319, 64
        %v1322 = vpop.permute.xlu0 %1321
        %v1324 = vadd.f32 %v504, %v1322
        %v1325 = vtanh.pop %v1324
        %v1326 = vsub.f32 1.0, %v1313
        %1328 = vrot.lane.b32.xlu0 %v1325, 96
        %v1329 = vpop.permute.xlu0 %1328
        %v1331 = vmul.f32 %v1326, %v1329
        %v1332 = vmul.f32 %v1313, %v1231
        %v1333 = vadd.f32 %v1331, %v1332
        %1335 = vrot.lane.b32.xlu0 %v1333, 96
        %v1336 = vpop.permute.xlu0 %1335
        %1338 = vst.msk [vmem:[#allocation2] sm:$0xff] %vm508, %v1336
        %1339 = vmatprep.subr.mxu0 0.0
        %1340 = vmatpush1.msra.mxu0 %v212
        %1341 = vmatprep.subr.mxu0 0.0
        %1342 = vmatpush1.msra.mxu0 %v213
        %1343 = vmatprep.subr.mxu0 0.0
        %1344 = vmatpush1.msra.mxu0 %v214
        %1345 = vmatprep.subr.mxu0 0.0
        %1346 = vmatpush1.msra.mxu0 0.0
        %1347 = vmatprep.subr.mxu0 0.0
        %1348 = vmatpush1.msra.mxu0 0.0
        %1349 = vmatprep.subr.mxu0 0.0
        %1350 = vmatpush1.msra.mxu0 0.0
        %1351 = vmatprep.subr.mxu0 0.0
        %1352 = vmatpush1.msra.mxu0 0.0
        %1353 = vmatprep.subr.mxu0 0.0
        %1354 = vmatpush1.msra.mxu0 0.0
        %1355 = vmatprep.subr.mxu0 0.0
        %1356 = vmatpush1.msra.mxu0 0.0
        %1357 = vmatprep.subr.mxu0 0.0
        %1358 = vmatpush1.msra.mxu0 0.0
        %1359 = vmatprep.subr.mxu0 0.0
        %1360 = vmatpush1.msra.mxu0 0.0
        %1361 = vmatprep.subr.mxu0 0.0
        %1362 = vmatpush1.msra.mxu0 0.0
        %1363 = vmatprep.subr.mxu0 0.0
        %1364 = vmatpush1.msra.mxu0 0.0
        %1365 = vmatprep.subr.mxu0 0.0
        %1366 = vmatpush1.msra.mxu0 0.0
        %1367 = vmatprep.subr.mxu0 0.0
        %1368 = vmatpush1.msra.mxu0 0.0
        %1369 = vmatprep.subr.mxu0 0.0
        %1370 = vmatpush1.msra.mxu0 0.0
        %1371 = vmatprep.subr.mxu0 0.0
        %1372 = vmatpush1.msra.mxu0 0.0
        %1373 = vmatprep.subr.mxu0 0.0
        %1374 = vmatpush1.msra.mxu0 0.0
        %1375 = vmatprep.subr.mxu0 0.0
        %1376 = vmatpush1.msra.mxu0 0.0
        %1377 = vmatprep.subr.mxu0 0.0
        %1378 = vmatpush1.msra.mxu0 0.0
        %1379 = vmatprep.subr.mxu0 0.0
        %1380 = vmatpush1.msra.mxu0 0.0
        %1381 = vmatprep.subr.mxu0 0.0
        %1382 = vmatpush1.msra.mxu0 0.0
        %1383 = vmatprep.subr.mxu0 0.0
        %1384 = vmatpush1.msra.mxu0 0.0
        %1385 = vmatprep.subr.mxu0 0.0
        %1386 = vmatpush1.msra.mxu0 0.0
        %1387 = vmatprep.subr.mxu0 0.0
        %1388 = vmatpush1.msra.mxu0 0.0
        %1389 = vmatprep.subr.mxu0 0.0
        %1390 = vmatpush1.msra.mxu0 0.0
        %1391 = vmatprep.subr.mxu0 0.0
        %1392 = vmatpush1.msra.mxu0 0.0
        %1393 = vmatprep.subr.mxu0 0.0
        %1394 = vmatpush1.msra.mxu0 0.0
        %1395 = vmatprep.subr.mxu0 0.0
        %1396 = vmatpush1.msra.mxu0 0.0
        %1397 = vmatprep.subr.mxu0 0.0
        %1398 = vmatpush1.msra.mxu0 0.0
        %1399 = vmatprep.subr.mxu0 0.0
        %1400 = vmatpush1.msra.mxu0 0.0
        %1401 = vmatprep.subr.mxu0 0.0
        %1402 = vmatpush1.msra.mxu0 0.0
        %1403 = vmatprep.mubr.f32.mxu0 0.0
        %1404 = vmatmul.mubr.f32.gmra.mrb[0].mxu0 %v237
        %v1405 = vpop.f32.mrb[0].mxu0
        %v1406 = vadd.f32 0.0, %v1405
        %v1407 = vpop.f32.mrb[0].mxu0
        %1408 = vmatprep.mubr.f32.mxu0 0.0
        %1409 = vmatmul.mubr.f32.gmra.mrb[0].mxu0 %v240
        %v1410 = vpop.f32.mrb[0].mxu0
        %v1411 = vadd.f32 0.0, %v1410
        %v1412 = vpop.f32.mrb[0].mxu0
        %1413 = vmatprep.mubr.f32.mxu0 0.0
        %1414 = vmatmul.mubr.f32.gmra.mrb[0].mxu0 %v243
        %v1415 = vpop.f32.mrb[0].mxu0
        %v1416 = vadd.f32 0.0, %v1415
        %v1417 = vpop.f32.mrb[0].mxu0
        %1418 = vmatprep.mubr.f32.mxu0 0.0
        %1419 = vmatmul.mubr.f32.gmra.mrb[0].mxu0 %v246
        %v1420 = vpop.f32.mrb[0].mxu0
        %v1421 = vadd.f32 0.0, %v1420
        %v1422 = vpop.f32.mrb[0].mxu0
        %1423 = vmatprep.mubr.f32.mxu0 0.0
        %1424 = vmatmul.mubr.f32.gmra.mrb[0].mxu0 %v249
        %v1425 = vpop.f32.mrb[0].mxu0
        %v1426 = vadd.f32 0.0, %v1425
        %v1427 = vpop.f32.mrb[0].mxu0
        %1428 = vmatprep.mubr.f32.mxu0 0.0
        %1429 = vmatmul.mubr.f32.gmra.mrb[0].mxu0 %v252
        %v1430 = vpop.f32.mrb[0].mxu0
        %v1431 = vadd.f32 0.0, %v1430
        %v1432 = vpop.f32.mrb[0].mxu0
        %1433 = vmatprep.mubr.f32.mxu0 0.0
        %1434 = vmatmul.mubr.f32.gmra.mrb[0].mxu0 %v255
        %v1435 = vpop.f32.mrb[0].mxu0
        %v1436 = vadd.f32 0.0, %v1435
        %v1437 = vpop.f32.mrb[0].mxu0
        %1438 = vmatprep.mubr.f32.mxu0 0.0
        %1439 = vmatmul.mubr.f32.gmra.mrb[0].mxu0 %v258
        %v1440 = vpop.f32.mrb[0].mxu0
        %v1441 = vadd.f32 0.0, %v1440
        %v1442 = vpop.f32.mrb[0].mxu0
        %1443 = vdwg.mxu0
        %v1444 = vsel %vm508, %v1336, 0
        %1446 = vmatprep.subr.mxu0 0.0
        %1447 = vmatpush1.msra.mxu0 %v208
        %1448 = vmatprep.subr.mxu0 0.0
        %1449 = vmatpush1.msra.mxu0 %v209
        %1450 = vmatprep.subr.mxu0 0.0
        %1451 = vmatpush1.msra.mxu0 %v210
        %1452 = vmatprep.subr.mxu0 0.0
        %1453 = vmatpush1.msra.mxu0 %v211
        %1454 = vmatprep.subr.mxu0 0.0
        %1455 = vmatpush1.msra.mxu0 0.0
        %1456 = vmatprep.subr.mxu0 0.0
        %1457 = vmatpush1.msra.mxu0 0.0
        %1458 = vmatprep.subr.mxu0 0.0
        %1459 = vmatpush1.msra.mxu0 0.0
        %1460 = vmatprep.subr.mxu0 0.0
        %1461 = vmatpush1.msra.mxu0 0.0
        %1462 = vmatprep.subr.mxu0 0.0
        %1463 = vmatpush1.msra.mxu0 0.0
        %1464 = vmatprep.subr.mxu0 0.0
        %1465 = vmatpush1.msra.mxu0 0.0
        %1466 = vmatprep.subr.mxu0 0.0
        %1467 = vmatpush1.msra.mxu0 0.0
        %1468 = vmatprep.subr.mxu0 0.0
        %1469 = vmatpush1.msra.mxu0 0.0
        %1470 = vmatprep.subr.mxu0 0.0
        %1471 = vmatpush1.msra.mxu0 0.0
        %1472 = vmatprep.subr.mxu0 0.0
        %1473 = vmatpush1.msra.mxu0 0.0
        %1474 = vmatprep.subr.mxu0 0.0
        %1475 = vmatpush1.msra.mxu0 0.0
        %1476 = vmatprep.subr.mxu0 0.0
        %1477 = vmatpush1.msra.mxu0 0.0
        %1478 = vmatprep.subr.mxu0 0.0
        %1479 = vmatpush1.msra.mxu0 0.0
        %1480 = vmatprep.subr.mxu0 0.0
        %1481 = vmatpush1.msra.mxu0 0.0
        %1482 = vmatprep.subr.mxu0 0.0
        %1483 = vmatpush1.msra.mxu0 0.0
        %1484 = vmatprep.subr.mxu0 0.0
        %1485 = vmatpush1.msra.mxu0 0.0
        %1486 = vmatprep.subr.mxu0 0.0
        %1487 = vmatpush1.msra.mxu0 0.0
        %1488 = vmatprep.subr.mxu0 0.0
        %1489 = vmatpush1.msra.mxu0 0.0
        %1490 = vmatprep.subr.mxu0 0.0
        %1491 = vmatpush1.msra.mxu0 0.0
        %1492 = vmatprep.subr.mxu0 0.0
        %1493 = vmatpush1.msra.mxu0 0.0
        %1494 = vmatprep.subr.mxu0 0.0
        %1495 = vmatpush1.msra.mxu0 0.0
        %1496 = vmatprep.subr.mxu0 0.0
        %1497 = vmatpush1.msra.mxu0 0.0
        %1498 = vmatprep.subr.mxu0 0.0
        %1499 = vmatpush1.msra.mxu0 0.0
        %1500 = vmatprep.subr.mxu0 0.0
        %1501 = vmatpush1.msra.mxu0 0.0
        %1502 = vmatprep.subr.mxu0 0.0
        %1503 = vmatpush1.msra.mxu0 0.0
        %1504 = vmatprep.subr.mxu0 0.0
        %1505 = vmatpush1.msra.mxu0 0.0
        %1506 = vmatprep.subr.mxu0 0.0
        %1507 = vmatpush1.msra.mxu0 0.0
        %1508 = vmatprep.subr.mxu0 0.0
        %1509 = vmatpush1.msra.mxu0 0.0
        %1510 = vmatprep.mubr.f32.mxu0 0.0
        %1511 = vmatmul.mubr.f32.gmra.mrb[0].mxu0 %v623
        %v1512 = vpop.f32.mrb[0].mxu0
        %v1513 = vadd.f32 %v1406, %v1512
        %v1514 = vpop.f32.mrb[0].mxu0
        %1515 = vmatprep.mubr.f32.mxu0 0.0
        %1516 = vmatmul.mubr.f32.gmra.mrb[0].mxu0 %v725
        %v1517 = vpop.f32.mrb[0].mxu0
        %v1518 = vadd.f32 %v1411, %v1517
        %v1519 = vpop.f32.mrb[0].mxu0
        %1520 = vmatprep.mubr.f32.mxu0 0.0
        %1521 = vmatmul.mubr.f32.gmra.mrb[0].mxu0 %v827
        %v1522 = vpop.f32.mrb[0].mxu0
        %v1523 = vadd.f32 %v1416, %v1522
        %v1524 = vpop.f32.mrb[0].mxu0
        %1525 = vmatprep.mubr.f32.mxu0 0.0
        %1526 = vmatmul.mubr.f32.gmra.mrb[0].mxu0 %v929
        %v1527 = vpop.f32.mrb[0].mxu0
        %v1528 = vadd.f32 %v1421, %v1527
        %v1529 = vpop.f32.mrb[0].mxu0
        %1530 = vmatprep.mubr.f32.mxu0 0.0
        %1531 = vmatmul.mubr.f32.gmra.mrb[0].mxu0 %v1031
        %v1532 = vpop.f32.mrb[0].mxu0
        %v1533 = vadd.f32 %v1426, %v1532
        %v1534 = vpop.f32.mrb[0].mxu0
        %1535 = vmatprep.mubr.f32.mxu0 0.0
        %1536 = vmatmul.mubr.f32.gmra.mrb[0].mxu0 %v1133
        %v1537 = vpop.f32.mrb[0].mxu0
        %v1538 = vadd.f32 %v1431, %v1537
        %v1539 = vpop.f32.mrb[0].mxu0
        %1540 = vmatprep.mubr.f32.mxu0 0.0
        %1541 = vmatmul.mubr.f32.gmra.mrb[0].mxu0 %v1235
        %v1542 = vpop.f32.mrb[0].mxu0
        %v1543 = vadd.f32 %v1436, %v1542
        %v1544 = vpop.f32.mrb[0].mxu0
        %1545 = vmatprep.mubr.f32.mxu0 0.0
        %1546 = vmatmul.mubr.f32.gmra.mrb[0].mxu0 %v1444
        %v1547 = vpop.f32.mrb[0].mxu0
        %v1548 = vadd.f32 %v1441, %v1547
        %v1549 = vpop.f32.mrb[0].mxu0
        %1550 = vdwg.mxu0
        %v1551 = vmax.f32 %v1513, 0.0
        %v1552 = vmax.f32 %v1518, 0.0
        %v1553 = vmax.f32 %v1523, 0.0
        %v1554 = vmax.f32 %v1528, 0.0
        %v1555 = vmax.f32 %v1533, 0.0
        %v1556 = vmax.f32 %v1538, 0.0
        %v1557 = vmax.f32 %v1543, 0.0
        %v1558 = vmax.f32 %v1548, 0.0
        %v1559 = vlaneseq
        %v1560 = vshrl.u32 %v1559, 7
        %v1561 = vsub.s32 0, %v1560
        %v1562 = vrot.slane %v226, %v1561
        %v1564 = vsel %vm377, %v1551, 0
        %v1567 = vsel %vm377, %v1552, 0
        %v1570 = vsel %vm377, %v1553, 0
        %v1573 = vsel %vm377, %v1554, 0
        %v1576 = vsel %vm377, %v1555, 0
        %v1579 = vsel %vm377, %v1556, 0
        %v1582 = vsel %vm377, %v1557, 0
        %v1585 = vsel %vm377, %v1558, 0
        %1587 = vmatprep.subr.mxu0 0.0
        %1588 = vmatpush1.msra.mxu0 %v215
        %1589 = vmatprep.subr.mxu0 0.0
        %1590 = vmatpush1.msra.mxu0 %v216
        %1591 = vmatprep.subr.mxu0 0.0
        %1592 = vmatpush1.msra.mxu0 %v217
        %1593 = vmatprep.subr.mxu0 0.0
        %1594 = vmatpush1.msra.mxu0 %v218
        %1595 = vmatprep.subr.mxu0 0.0
        %1596 = vmatpush1.msra.mxu0 %v219
        %1597 = vmatprep.subr.mxu0 0.0
        %1598 = vmatpush1.msra.mxu0 %v220
        %1599 = vmatprep.subr.mxu0 0.0
        %1600 = vmatpush1.msra.mxu0 %v221
        %1601 = vmatprep.subr.mxu0 0.0
        %1602 = vmatpush1.msra.mxu0 %v222
        %1603 = vmatprep.subr.mxu0 0.0
        %1604 = vmatpush1.msra.mxu0 0.0
        %1605 = vmatprep.subr.mxu0 0.0
        %1606 = vmatpush1.msra.mxu0 0.0
        %1607 = vmatprep.subr.mxu0 0.0
        %1608 = vmatpush1.msra.mxu0 0.0
        %1609 = vmatprep.subr.mxu0 0.0
        %1610 = vmatpush1.msra.mxu0 0.0
        %1611 = vmatprep.subr.mxu0 0.0
        %1612 = vmatpush1.msra.mxu0 0.0
        %1613 = vmatprep.subr.mxu0 0.0
        %1614 = vmatpush1.msra.mxu0 0.0
        %1615 = vmatprep.subr.mxu0 0.0
        %1616 = vmatpush1.msra.mxu0 0.0
        %1617 = vmatprep.subr.mxu0 0.0
        %1618 = vmatpush1.msra.mxu0 0.0
        %1619 = vmatprep.subr.mxu0 0.0
        %1620 = vmatpush1.msra.mxu0 0.0
        %1621 = vmatprep.subr.mxu0 0.0
        %1622 = vmatpush1.msra.mxu0 0.0
        %1623 = vmatprep.subr.mxu0 0.0
        %1624 = vmatpush1.msra.mxu0 0.0
        %1625 = vmatprep.subr.mxu0 0.0
        %1626 = vmatpush1.msra.mxu0 0.0
        %1627 = vmatprep.subr.mxu0 0.0
        %1628 = vmatpush1.msra.mxu0 0.0
        %1629 = vmatprep.subr.mxu0 0.0
        %1630 = vmatpush1.msra.mxu0 0.0
        %1631 = vmatprep.subr.mxu0 0.0
        %1632 = vmatpush1.msra.mxu0 0.0
        %1633 = vmatprep.subr.mxu0 0.0
        %1634 = vmatpush1.msra.mxu0 0.0
        %1635 = vmatprep.subr.mxu0 0.0
        %1636 = vmatpush1.msra.mxu0 0.0
        %1637 = vmatprep.subr.mxu0 0.0
        %1638 = vmatpush1.msra.mxu0 0.0
        %1639 = vmatprep.subr.mxu0 0.0
        %1640 = vmatpush1.msra.mxu0 0.0
        %1641 = vmatprep.subr.mxu0 0.0
        %1642 = vmatpush1.msra.mxu0 0.0
        %1643 = vmatprep.subr.mxu0 0.0
        %1644 = vmatpush1.msra.mxu0 0.0
        %1645 = vmatprep.subr.mxu0 0.0
        %1646 = vmatpush1.msra.mxu0 0.0
        %1647 = vmatprep.subr.mxu0 0.0
        %1648 = vmatpush1.msra.mxu0 0.0
        %1649 = vmatprep.subr.mxu0 0.0
        %1650 = vmatpush1.msra.mxu0 0.0
        %1651 = vmatprep.mubr.f32.mxu0 0.0
        %1652 = vmatmul.mubr.f32.gmra.mrb[0].mxu0 %v1564
        %v1653 = vpop.f32.mrb[0].mxu0
        %v1654 = vadd.f32 %v1562, %v1653
        %v1655 = vpop.f32.mrb[0].mxu0
        %1656 = vmatprep.mubr.f32.mxu0 0.0
        %1657 = vmatmul.mubr.f32.gmra.mrb[0].mxu0 %v1567
        %v1658 = vpop.f32.mrb[0].mxu0
        %v1659 = vadd.f32 %v1562, %v1658
        %v1660 = vpop.f32.mrb[0].mxu0
        %1661 = vmatprep.mubr.f32.mxu0 0.0
        %1662 = vmatmul.mubr.f32.gmra.mrb[0].mxu0 %v1570
        %v1663 = vpop.f32.mrb[0].mxu0
        %v1664 = vadd.f32 %v1562, %v1663
        %v1665 = vpop.f32.mrb[0].mxu0
        %1666 = vmatprep.mubr.f32.mxu0 0.0
        %1667 = vmatmul.mubr.f32.gmra.mrb[0].mxu0 %v1573
        %v1668 = vpop.f32.mrb[0].mxu0
        %v1669 = vadd.f32 %v1562, %v1668
        %v1670 = vpop.f32.mrb[0].mxu0
        %1671 = vmatprep.mubr.f32.mxu0 0.0
        %1672 = vmatmul.mubr.f32.gmra.mrb[0].mxu0 %v1576
        %v1673 = vpop.f32.mrb[0].mxu0
        %v1674 = vadd.f32 %v1562, %v1673
        %v1675 = vpop.f32.mrb[0].mxu0
        %1676 = vmatprep.mubr.f32.mxu0 0.0
        %1677 = vmatmul.mubr.f32.gmra.mrb[0].mxu0 %v1579
        %v1678 = vpop.f32.mrb[0].mxu0
        %v1679 = vadd.f32 %v1562, %v1678
        %v1680 = vpop.f32.mrb[0].mxu0
        %1681 = vmatprep.mubr.f32.mxu0 0.0
        %1682 = vmatmul.mubr.f32.gmra.mrb[0].mxu0 %v1582
        %v1683 = vpop.f32.mrb[0].mxu0
        %v1684 = vadd.f32 %v1562, %v1683
        %v1685 = vpop.f32.mrb[0].mxu0
        %1686 = vmatprep.mubr.f32.mxu0 0.0
        %1687 = vmatmul.mubr.f32.gmra.mrb[0].mxu0 %v1585
        %v1688 = vpop.f32.mrb[0].mxu0
        %v1689 = vadd.f32 %v1562, %v1688
        %v1690 = vpop.f32.mrb[0].mxu0
        %1691 = vdwg.mxu0
        %v1692 = vmax.f32 %v1654, 0.0
        %v1693 = vmax.f32 %v1659, 0.0
        %v1694 = vmax.f32 %v1664, 0.0
        %v1695 = vmax.f32 %v1669, 0.0
        %v1696 = vmax.f32 %v1674, 0.0
        %v1697 = vmax.f32 %v1679, 0.0
        %v1698 = vmax.f32 %v1684, 0.0
        %v1699 = vmax.f32 %v1689, 0.0
        %vm1700 = vcmask 531456
        %v1702 = vsel %vm1700, %v223, 0
        %v1705 = vsel %vm1700, %v1692, 0
        %v1708 = vsel %vm1700, %v1693, 0
        %v1711 = vsel %vm1700, %v1694, 0
        %v1714 = vsel %vm1700, %v1695, 0
        %v1717 = vsel %vm1700, %v1696, 0
        %v1720 = vsel %vm1700, %v1697, 0
        %v1723 = vsel %vm1700, %v1698, 0
        %v1726 = vsel %vm1700, %v1699, 0
        %1728 = vmatprep.subr.mxu0 0.0
        %1729 = vmatpush1.xpose.msra.mxu0 %v1705
        %1730 = vmatprep.subr.mxu0 0.0
        %1731 = vmatpush1.xpose.msra.mxu0 %v1708
        %1732 = vmatprep.subr.mxu0 0.0
        %1733 = vmatpush1.xpose.msra.mxu0 %v1711
        %1734 = vmatprep.subr.mxu0 0.0
        %1735 = vmatpush1.xpose.msra.mxu0 %v1714
        %1736 = vmatprep.subr.mxu0 0.0
        %1737 = vmatpush1.xpose.msra.mxu0 %v1717
        %1738 = vmatprep.subr.mxu0 0.0
        %1739 = vmatpush1.xpose.msra.mxu0 %v1720
        %1740 = vmatprep.subr.mxu0 0.0
        %1741 = vmatpush1.xpose.msra.mxu0 %v1723
        %1742 = vmatprep.subr.mxu0 0.0
        %1743 = vmatpush1.xpose.msra.mxu0 %v1726
        %1744 = vmatprep.subr.mxu0 0.0
        %1745 = vmatpush1.xpose.msra.mxu0 0.0
        %1746 = vmatprep.subr.mxu0 0.0
        %1747 = vmatpush1.xpose.msra.mxu0 0.0
        %1748 = vmatprep.subr.mxu0 0.0
        %1749 = vmatpush1.xpose.msra.mxu0 0.0
        %1750 = vmatprep.subr.mxu0 0.0
        %1751 = vmatpush1.xpose.msra.mxu0 0.0
        %1752 = vmatprep.subr.mxu0 0.0
        %1753 = vmatpush1.xpose.msra.mxu0 0.0
        %1754 = vmatprep.subr.mxu0 0.0
        %1755 = vmatpush1.xpose.msra.mxu0 0.0
        %1756 = vmatprep.subr.mxu0 0.0
        %1757 = vmatpush1.xpose.msra.mxu0 0.0
        %1758 = vmatprep.subr.mxu0 0.0
        %1759 = vmatpush1.xpose.msra.mxu0 0.0
        %1760 = vmatprep.subr.mxu0 0.0
        %1761 = vmatpush1.xpose.msra.mxu0 0.0
        %1762 = vmatprep.subr.mxu0 0.0
        %1763 = vmatpush1.xpose.msra.mxu0 0.0
        %1764 = vmatprep.subr.mxu0 0.0
        %1765 = vmatpush1.xpose.msra.mxu0 0.0
        %1766 = vmatprep.subr.mxu0 0.0
        %1767 = vmatpush1.xpose.msra.mxu0 0.0
        %1768 = vmatprep.subr.mxu0 0.0
        %1769 = vmatpush1.xpose.msra.mxu0 0.0
        %1770 = vmatprep.subr.mxu0 0.0
        %1771 = vmatpush1.xpose.msra.mxu0 0.0
        %1772 = vmatprep.subr.mxu0 0.0
        %1773 = vmatpush1.xpose.msra.mxu0 0.0
        %1774 = vmatprep.subr.mxu0 0.0
        %1775 = vmatpush1.xpose.msra.mxu0 0.0
        %1776 = vmatprep.subr.mxu0 0.0
        %1777 = vmatpush1.xpose.msra.mxu0 0.0
        %1778 = vmatprep.subr.mxu0 0.0
        %1779 = vmatpush1.xpose.msra.mxu0 0.0
        %1780 = vmatprep.subr.mxu0 0.0
        %1781 = vmatpush1.xpose.msra.mxu0 0.0
        %1782 = vmatprep.subr.mxu0 0.0
        %1783 = vmatpush1.xpose.msra.mxu0 0.0
        %1784 = vmatprep.subr.mxu0 0.0
        %1785 = vmatpush1.xpose.msra.mxu0 0.0
        %1786 = vmatprep.subr.mxu0 0.0
        %1787 = vmatpush1.xpose.msra.mxu0 0.0
        %1788 = vmatprep.subr.mxu0 0.0
        %1789 = vmatpush1.xpose.msra.mxu0 0.0
        %1790 = vmatprep.subr.mxu0 0.0
        %1791 = vmatpush1.xpose.msra.mxu0 0.0
        %1792 = vmatprep.mubr.f32.mxu0 0.0
        %1793 = vmatmul.mubr.f32.gmra.mrb[0].mxu0 %v1702
        %v1794 = vpop.f32.mrb[0].mxu0
        %v1795 = vadd.f32 0.0, %v1794
        %v1796 = vpop.f32.mrb[0].mxu0
        %1797 = vdwg.mxu0
        %vm1798 = vcmask 517120
        %1799 = vst.msk [vmem:[%s176] sm:$0x3] %vm1798, %v1795
        %s1800 = sand.u32 %s88, 1
        %s1801 = scalar_lea.sflag [#allocation5], %s1800
        %s1802 = sand.u32 %s88, 1
        %s1803 = smul.addr %s1802, 2
        %s1804 = scalar_lea.vmem [#allocation6], %s1803
        // Predicated region
        $region37: #{tpu_custom_call.1} parent=27 // pred_check
          %p1805 = pneg %p98
        $region38: #{tpu_custom_call.1} parent=27 // pred_check_branch
          %1807 = sbr.rel (%p1805) target = $region40
        $region39: #{tpu_custom_call.1} parent=27 // pred_region
          %s1809 = ssub.s32 32, 32
          %1810 = vsyncadd %s1801, %s1809
          %s1811 = sadd.s32 %s22, %s21
          %s1812 = smul.addr %s1811, 32
          %s1813 = scalar_lea.hbm %s2, %s1812
          %s1815 = sshll.u32 %s1804, 4
          %s1816 = int_to_ptr.vmem [resolvable:$true] %s1815
          %1818 = dma.vmem_to_hbm [thread:$0]  %s1816, 32, %s1813, %s1801
        $region40: #{tpu_custom_call.1} parent=27 // pred_fallthru
          _
      $region28: #{tpu_custom_call.1} parent=5 // pred_fallthru
        _
      %p1819 = scmp.le.s32.totalorder 2, %s12
      // Predicated region
      $region41: #{tpu_custom_call.1} parent=5 // pred_check
        %p1820 = pneg %p1819
      $region42: #{tpu_custom_call.1} parent=5 // pred_check_branch
        %1822 = sbr.rel (%p1820) target = $region44
      $region43: #{tpu_custom_call.1} parent=5 // pred_region
        %s1823 = ssub.s32 %s12, 2
        // Predicated region
        $region45: #{tpu_custom_call.1} parent=43 // pred_check
          %p1824 = pneg %p104
        $region46: #{tpu_custom_call.1} parent=43 // pred_check_branch
          %1826 = sbr.rel (%p1824) target = $region48
        $region47: #{tpu_custom_call.1} parent=43 // pred_region
          %s1827 = sand.u32 %s89, 1
          %s1828 = scalar_lea.sflag [#allocation5], %s1827
          %s1829 = sand.u32 %s89, 1
          %s1830 = smul.addr %s1829, 2
          %s1831 = scalar_lea.vmem [#allocation6], %s1830
          %1832 = dma.done %s1828, 32
        $region48: #{tpu_custom_call.1} parent=43 // pred_fallthru
          _
      $region44: #{tpu_custom_call.1} parent=5 // pred_fallthru
        _
    $region6: #{tpu_custom_call.1} parent=1 // loop_footer
      %s16 = sadd.s32 1, %s12
    $region7: #{tpu_custom_call.1} parent=1 // loop_footer_branch
      %11 = sbr.rel target = $region3
    $region8: #{tpu_custom_call.1} parent=1 // loop_exit
      _
    %1833 = vsyncpa [#allocation4], 1
    %s1834 = scalar_lea.sflag [#allocation4], 1
    %1835 = vsyncpa %s1834, 1
    %1836 = vsyncpa [#allocation5], 1
    %s1837 = scalar_lea.sflag [#allocation5], 1
    %1838 = vsyncpa %s1837, 1

</llo_original>
